<compile_context>
chip_gen: v6e
topology: v6e:2x2x1
jax: 0.10.0
libtpu: 0.0.40
codegen_flags: <defaults>
</compile_context>

<pallas_src>
import functools
import math

import jax
import jax.numpy as jnp
from jax import lax
from jax.experimental import pallas as pl
from jax.experimental.pallas import tpu as pltpu


def _round_up(x, m):
    return ((x + m - 1) // m) * m


# ----------------------------------------------------------------------------
# Pallas kernel: conv branches + CWT magnitude fused, output in final layout.
# ----------------------------------------------------------------------------
def _fused_feature_kernel(p_ref, wc_ref, b_ref, ww_ref, o_ref):
    """One grid step = (one batch item, one time tile).

    p_ref  : (1, K, tm)          bf16  shared im2col patches, time on lanes
    wc_ref : (n_br*F, K)         bf16  fused Conv1d weights (all kernel sizes)
    b_ref  : (n_br*F, 1)         f32   fused Conv1d bias
    ww_ref : (2*C*F, K)          bf16  fused Morlet real|imag weights
    o_ref  : (1, n_br+C, F, tm)  f32   final (channel, height, time) layout
    """
    p = p_ref[0]                                                    # (K, tm)

    conv = jnp.dot(wc_ref[...], p, preferred_element_type=jnp.float32)
    conv = conv + b_ref[...]                                        # (n_br*F, tm)

    cwt = jnp.dot(ww_ref[...], p, preferred_element_type=jnp.float32)
    half = cwt.shape[0] // 2                                        # multiple of 8
    re, im = cwt[:half], cwt[half:]
    mag = jnp.sqrt(re * re + im * im)                               # (C*F, tm)

    f = o_ref.shape[2]
    tm = o_ref.shape[3]
    n_br = conv.shape[0] // f
    c_in = mag.shape[0] // f
    # sublane-aligned splits of the leading dim -> layout-free reshapes/stores
    o_ref[0, :n_br, :, :] = conv.reshape(n_br, f, tm)
    o_ref[0, n_br:, :, :] = mag.reshape(c_in, f, tm)


def _time_tile(t_out, batch, max_tm=1024):
    """Lane-dense time tile: multiple of 128 (or full tiny dim), big as VMEM allows."""
    if t_out <= 128:
        return t_out                       # full-dim block (legal for any size)
    tm = min(max_tm, (t_out // 128) * 128)
    if batch == 1:                         # keep >= 2 grid programs for v7x megacore
        tm = min(tm, max(128, ((t_out // 2) // 128) * 128))
    return tm


def fused_feature_call(patches, w_conv, bias, w_wave, n_br, c_in, f, t_out, tm):
    b = patches.shape[0]
    k = patches.shape[1]
    n_conv = n_br * f
    n_wave = 2 * c_in * f
    flops = 2 * b * t_out * k * (n_conv + n_wave) + 3 * b * t_out * c_in * f
    bytes_accessed = (patches.size * patches.dtype.itemsize
                      + w_conv.size * w_conv.dtype.itemsize
                      + w_wave.size * w_wave.dtype.itemsize
                      + bias.size * bias.dtype.itemsize
                      + b * (n_br + c_in) * f * t_out * 4)
    return pl.pallas_call(
        _fused_feature_kernel,
        out_shape=jax.ShapeDtypeStruct((b, n_br + c_in, f, t_out), jnp.float32),
        grid=(b, pl.cdiv(t_out, tm)),
        in_specs=[
            pl.BlockSpec((1, k, tm), lambda bi, ti: (bi, 0, ti)),
            pl.BlockSpec((n_conv, k), lambda bi, ti: (0, 0)),
            pl.BlockSpec((n_conv, 1), lambda bi, ti: (0, 0)),
            pl.BlockSpec((n_wave, k), lambda bi, ti: (0, 0)),
        ],
        out_specs=pl.BlockSpec((1, n_br + c_in, f, tm),
                               lambda bi, ti: (bi, 0, 0, ti)),
        compiler_params=pltpu.CompilerParams(
            dimension_semantics=("parallel", "parallel"),
            vmem_limit_bytes=48 * 1024 * 1024),
        cost_estimate=pl.CostEstimate(
            flops=flops,
            transcendentals=b * t_out * c_in * f,
            bytes_accessed=bytes_accessed),
    )(patches, w_conv, bias, w_wave)


# ----------------------------------------------------------------------------
# Host-side glue: shared transposed im2col, fused-weight construction, banks.
# ----------------------------------------------------------------------------
def build_shared_patches(x, stride, center, k_window):
    """x:(B,C,T) f32 -> (B, n_groups*C*stride, T//stride) bf16.

    Row kk = q*(C*stride) + c*stride + r holds x[b, c, stride*t + (stride*q+r) - center]
    at lane t (zero padded).  Built from plain slices/reshapes (no gather).
    """
    b, c, t = x.shape
    t_out = t // stride
    n_groups = k_window // stride
    xb = x.astype(jnp.bfloat16)
    pad_r = max(0, k_window - center - stride)
    xp = jnp.pad(xb, ((0, 0), (0, 0), (center, pad_r)))
    pieces = []
    for q in range(n_groups):
        seg = lax.slice_in_dim(xp, q * stride, q * stride + t, axis=2)   # (B,C,T)
        seg = seg.reshape(b, c, t_out, stride).transpose(0, 1, 3, 2)     # (B,C,stride,T_out)
        pieces.append(seg)
    pat = jnp.stack(pieces, axis=1)                # (B, n_groups, C, stride, T_out)
    return pat.reshape(b, n_groups * c * stride, t_out)


def build_fused_conv_weight(conv_params, kernel_sizes, in_channels, stride, center, k_window):
    """-> W:(n_br*F, n_groups*C*stride) bf16, bias:(n_br*F,1) f32."""
    n_groups = k_window // stride
    f = conv_params[0][0].shape[0]
    rows, biases = [], []
    for (w, bias), ks in zip(conv_params, kernel_sizes):
        pad_k = (ks - 1) // 2
        off = center - pad_k
        assert 0 <= off and off + ks <= k_window
        big = jnp.zeros((f, in_channels, k_window), jnp.float32)
        big = big.at[:, :, off:off + ks].set(w)                        # centered window
        big = big.reshape(f, in_channels, n_groups, stride).transpose(0, 2, 1, 3)
        rows.append(big.reshape(f, n_groups * in_channels * stride))
        biases.append(bias)
    w_fused = jnp.concatenate(rows, axis=0).astype(jnp.bfloat16)
    b_fused = jnp.concatenate(biases, axis=0).astype(jnp.float32)[:, None]
    return w_fused, b_fused


def build_fused_wavelet_weight(wr, wi, in_channels, stride, center, k_window):
    """-> (2*C*H, n_groups*C*stride) bf16, block-diagonal over the input channel."""
    l, h = wr.shape
    n_groups = k_window // stride
    pad_w = (l - 1) // 2
    off = center - pad_w
    assert 0 <= off and off + l <= k_window
    parts = []
    for bank in (wr, wi):
        big = jnp.zeros((k_window, h), jnp.float32)
        big = big.at[off:off + l, :].set(bank)
        big = big.reshape(n_groups, stride, h).transpose(2, 0, 1)      # (H, n_groups, stride)
        full = jnp.zeros((in_channels, h, n_groups, in_channels, stride), jnp.float32)
        for c in range(in_channels):
            full = full.at[c, :, :, c, :].set(big)
        parts.append(full.reshape(in_channels * h, n_groups * in_channels * stride))
    return jnp.concatenate(parts, axis=0).astype(jnp.bfloat16)


def init_conv_params(key, in_channels, base_filters, kernel_sizes):
    """PyTorch Conv1d-default init: U(-1/sqrt(fan_in), 1/sqrt(fan_in))."""
    params = []
    for ks in kernel_sizes:
        key, kw, kb = jax.random.split(key, 3)
        fan_in = in_channels * ks
        bound = 1.0 / math.sqrt(fan_in)
        w = jax.random.uniform(kw, (base_filters, in_channels, ks),
                               jnp.float32, -bound, bound)
        b = jax.random.uniform(kb, (base_filters,), jnp.float32, -bound, bound)
        params.append((w, b))
    return params


def make_morlet_bank(height, win_len, dj, fmin, fmax,
                     sample_rate=1000.0, n_cycles=5.0):
    """L2-normalized Morlet bank: real/imag filters of shape (win_len, height)."""
    j = jnp.arange(height, dtype=jnp.float32)
    f_lo = max(float(fmin), 1.0)
    freqs = jnp.clip(float(fmax) * (2.0 ** (-dj * j)), f_lo, float(fmax))
    fn = freqs / sample_rate
    t = jnp.arange(win_len, dtype=jnp.float32) - (win_len - 1) / 2.0
    sigma = n_cycles / (2.0 * math.pi * fn)                    # (H,)
    env = jnp.exp(-0.5 * (t[:, None] / sigma[None, :]) ** 2)   # (L, H)
    phase = 2.0 * math.pi * fn[None, :] * t[:, None]
    wr = jnp.cos(phase) * env
    wi = jnp.sin(phase) * env
    norm = jnp.sqrt(jnp.sum(wr * wr + wi * wi, axis=0, keepdims=True)) + 1e-8
    return wr / norm, wi / norm


# ----------------------------------------------------------------------------
# Forward pass of WaveletCNN1DFeatureExtractor
# ----------------------------------------------------------------------------
def wavelet_cnn1d_feature_extractor(x, conv_params, wr, wi, kernel_sizes, stride):
    """x: (B, C, T) -> (B, len(kernel_sizes)+C, height, T//stride)."""
    b, c, t = x.shape
    f = conv_params[0][0].shape[0]                   # base_filters == height
    n_br = len(kernel_sizes)
    assert t % stride == 0
    t_out = t // stride

    pads = [(k - 1) // 2 for k in kernel_sizes]
    n_outs = [(t + 2 * p - k) // stride + 1 for k, p in zip(kernel_sizes, pads)]
    assert all(n == t_out for n in n_outs), "all kernel sizes must give equal output length"

    l_w = wr.shape[0]
    pad_w = (l_w - 1) // 2
    left_need = max(max(pads), pad_w)
    right_need = max(max(k - 1 - p for k, p in zip(kernel_sizes, pads)), l_w - 1 - pad_w)
    center = _round_up(left_need, stride)
    k_window = _round_up(center + right_need + 1, stride)     # 36 for the defaults

    patches = build_shared_patches(x, stride, center, k_window)           # (B, 108, T_out) bf16
    w_conv, bias = build_fused_conv_weight(conv_params, kernel_sizes, c,
                                           stride, center, k_window)
    w_wave = build_fused_wavelet_weight(wr, wi, c, stride, center, k_window)

    tm = _time_tile(t_out, b)
    return fused_feature_call(patches, w_conv, bias, w_wave, n_br, c, f, t_out, tm)


# ----------------------------------------------------------------------------
# Pure-JAX reference (correctness check only)
# ----------------------------------------------------------------------------
def reference_forward(x, conv_params, wr, wi, kernel_sizes, stride):
    b, c, t = x.shape
    t_out = t // stride
    branch_imgs = []
    for (w, bias), ks in zip(conv_params, kernel_sizes):
        pad = (ks - 1) // 2
        y = lax.conv_general_dilated(x, w, window_strides=(stride,),
                                     padding=[(pad, pad)],
                                     dimension_numbers=("NCH", "OIH", "NCH"))
        branch_imgs.append(y + bias[None, :, None])
    cnn_img = jnp.stack(branch_imgs, axis=1)                   # (B, n_br, F, T_out)

    l = wr.shape[0]
    pad_w = (l - 1) // 2
    xp = jnp.pad(x, ((0, 0), (0, 0), (pad_w, pad_w)))
    idx = jnp.arange(t_out)[:, None] * stride + jnp.arange(l)[None, :]
    win = xp[:, :, idx]                                        # (B, C, T_out, L)
    re = jnp.einsum("bctl,lh->bcht", win, wr)
    im = jnp.einsum("bctl,lh->bcht", win, wi)
    spec_img = jnp.sqrt(re * re + im * im)                     # (B, C, F, T_out)
    return jnp.concatenate([cnn_img, spec_img], axis=1)


# ----------------------------------------------------------------------------
if __name__ == "__main__":
    key = jax.random.PRNGKey(0)
    in_channels = 3
    base_filters = 128            # -> height
    kernel_sizes = (32, 16, 4, 2)
    stride = 4
    dj, fmin, fmax = 0.125, 0, 500
    batch, time_steps = 2, 64

    kx, kp = jax.random.split(key)
    x = jax.random.normal(kx, (batch, in_channels, time_steps), jnp.float32)
    conv_params = init_conv_params(kp, in_channels, base_filters, kernel_sizes)
    wr, wi = make_morlet_bank(base_filters, win_len=33, dj=dj, fmin=fmin, fmax=fmax)

    fwd = jax.jit(functools.partial(wavelet_cnn1d_feature_extractor,
                                    kernel_sizes=kernel_sizes, stride=stride))
    out = jax.block_until_ready(fwd(x, conv_params, wr, wi))

    expected = (batch, len(kernel_sizes) + in_channels, base_filters,
                time_steps // stride)
    assert out.shape == expected, (out.shape, expected)
    assert out.dtype == jnp.float32
    assert bool(jnp.all(jnp.isfinite(out)))

    ref = reference_forward(x, conv_params, wr, wi, kernel_sizes, stride)
    assert bool(jnp.allclose(out, ref, rtol=5e-2, atol=5e-2)), \
        float(jnp.max(jnp.abs(out - ref)))
    print("KERNEL_OK")
</pallas_src>

<mosaic_0001>
module attributes {stable_mosaic.version = 11 : i64} {
  func.func @_fused_feature_kernel(%arg0: i32, %arg1: i32, %arg2: memref<1x108x16xbf16, #tpu.memory_space<vmem>>, %arg3: memref<512x108xbf16, #tpu.memory_space<vmem>>, %arg4: memref<512x1xf32, #tpu.memory_space<vmem>>, %arg5: memref<768x108xbf16, #tpu.memory_space<vmem>>, %arg6: memref<1x7x128x16xf32, #tpu.memory_space<vmem>>) attributes {dimension_semantics = [#tpu.dimension_semantics<parallel>, #tpu.dimension_semantics<parallel>], iteration_bounds = array<i64: 2, 1>, scalar_prefetch = 0 : i64, scratch_operands = 0 : i64, tpu.core_type = #tpu.core_type<tc>, window_params = [{transform_indices = @transform_0, window_bounds = array<i64: 1, 108, 16>}, {pipeline_mode = #tpu.pipeline_mode<synchronous>, transform_indices = @transform_1, window_bounds = array<i64: 512, 108>}, {pipeline_mode = #tpu.pipeline_mode<synchronous>, transform_indices = @transform_2, window_bounds = array<i64: 512, 1>}, {pipeline_mode = #tpu.pipeline_mode<synchronous>, transform_indices = @transform_3, window_bounds = array<i64: 768, 108>}, {transform_indices = @transform_4, window_bounds = array<i64: 1, 7, 128, 16>}]} {
    %c0 = arith.constant 0 : index
    %c0_0 = arith.constant 0 : index
    %c0_1 = arith.constant 0 : index
    %0 = vector.load %arg2[%c0, %c0_0, %c0_1] : memref<1x108x16xbf16, #tpu.memory_space<vmem>>, vector<1x108x16xbf16>
    %1 = vector.shape_cast %0 : vector<1x108x16xbf16> to vector<108x16xbf16>
    %c0_2 = arith.constant 0 : index
    %c0_3 = arith.constant 0 : index
    %2 = vector.load %arg3[%c0_2, %c0_3] : memref<512x108xbf16, #tpu.memory_space<vmem>>, vector<512x108xbf16>
    %cst = arith.constant dense<0.000000e+00> : vector<512x16xf32>
    %3 = tpu.matmul %2, %1, %cst {dimension_numbers = #tpu.dot_dimension_numbers<[1], [0], [0], [1], [0, 0, 1, 1], [], []>} : vector<512x108xbf16>, vector<108x16xbf16>, vector<512x16xf32> -> vector<512x16xf32>
    %c0_4 = arith.constant 0 : index
    %c0_5 = arith.constant 0 : index
    %4 = vector.load %arg4[%c0_4, %c0_5] : memref<512x1xf32, #tpu.memory_space<vmem>>, vector<512x1xf32>
    %5 = vector.broadcast %4 : vector<512x1xf32> to vector<512x16xf32>
    %6 = arith.addf %3, %5 : vector<512x16xf32>
    %c0_6 = arith.constant 0 : index
    %c0_7 = arith.constant 0 : index
    %7 = vector.load %arg5[%c0_6, %c0_7] : memref<768x108xbf16, #tpu.memory_space<vmem>>, vector<768x108xbf16>
    %cst_8 = arith.constant dense<0.000000e+00> : vector<768x16xf32>
    %8 = tpu.matmul %7, %1, %cst_8 {dimension_numbers = #tpu.dot_dimension_numbers<[1], [0], [0], [1], [0, 0, 1, 1], [], []>} : vector<768x108xbf16>, vector<108x16xbf16>, vector<768x16xf32> -> vector<768x16xf32>
    %9 = vector.extract_strided_slice %8 {offsets = [0, 0], sizes = [384, 16], strides = [1, 1]} : vector<768x16xf32> to vector<384x16xf32>
    %10 = vector.extract_strided_slice %8 {offsets = [384, 0], sizes = [384, 16], strides = [1, 1]} : vector<768x16xf32> to vector<384x16xf32>
    %11 = arith.mulf %9, %9 : vector<384x16xf32>
    %12 = arith.mulf %10, %10 : vector<384x16xf32>
    %13 = arith.addf %11, %12 : vector<384x16xf32>
    %14 = math.sqrt %13 : vector<384x16xf32>
    %15 = vector.shape_cast %6 : vector<512x16xf32> to vector<4x128x16xf32>
    %c0_9 = arith.constant 0 : index
    %c0_10 = arith.constant 0 : index
    %c0_11 = arith.constant 0 : index
    %c0_12 = arith.constant 0 : index
    %16 = vector.load %arg6[%c0_9, %c0_10, %c0_11, %c0_12] : memref<1x7x128x16xf32, #tpu.memory_space<vmem>>, vector<1x4x128x16xf32>
    %17 = vector.shape_cast %16 : vector<1x4x128x16xf32> to vector<4x128x16xf32>
    %18 = vector.shape_cast %15 : vector<4x128x16xf32> to vector<1x4x128x16xf32>
    tpu.vector_store %arg6[%c0_9, %c0_10, %c0_11, %c0_12], %18 {strides = array<i32>} : memref<1x7x128x16xf32, #tpu.memory_space<vmem>>, vector<1x4x128x16xf32>,
    %19 = vector.shape_cast %14 : vector<384x16xf32> to vector<3x128x16xf32>
    %c0_13 = arith.constant 0 : index
    %c4 = arith.constant 4 : index
    %c0_14 = arith.constant 0 : index
    %c0_15 = arith.constant 0 : index
    %20 = vector.load %arg6[%c0_13, %c4, %c0_14, %c0_15] : memref<1x7x128x16xf32, #tpu.memory_space<vmem>>, vector<1x3x128x16xf32>
    %21 = vector.shape_cast %20 : vector<1x3x128x16xf32> to vector<3x128x16xf32>
    %22 = vector.shape_cast %19 : vector<3x128x16xf32> to vector<1x3x128x16xf32>
    tpu.vector_store %arg6[%c0_13, %c4, %c0_14, %c0_15], %22 {strides = array<i32>} : memref<1x7x128x16xf32, #tpu.memory_space<vmem>>, vector<1x3x128x16xf32>,
    return
  }
  func.func @transform_0(%arg0: i32, %arg1: i32) -> (i32, i32, i32) {
    %c0_i32 = arith.constant 0 : i32
    %c0_i32_0 = arith.constant 0 : i32
    return %arg0, %c0_i32, %arg1 : i32, i32, i32
  }
  func.func @transform_1(%arg0: i32, %arg1: i32) -> (i32, i32) {
    %c0_i32 = arith.constant 0 : i32
    %c0_i32_0 = arith.constant 0 : i32
    %c0_i32_1 = arith.constant 0 : i32
    return %c0_i32, %c0_i32_0 : i32, i32
  }
  func.func @transform_2(%arg0: i32, %arg1: i32) -> (i32, i32) {
    %c0_i32 = arith.constant 0 : i32
    %c0_i32_0 = arith.constant 0 : i32
    %c0_i32_1 = arith.constant 0 : i32
    return %c0_i32, %c0_i32_0 : i32, i32
  }
  func.func @transform_3(%arg0: i32, %arg1: i32) -> (i32, i32) {
    %c0_i32 = arith.constant 0 : i32
    %c0_i32_0 = arith.constant 0 : i32
    %c0_i32_1 = arith.constant 0 : i32
    return %c0_i32, %c0_i32_0 : i32, i32
  }
  func.func @transform_4(%arg0: i32, %arg1: i32) -> (i32, i32, i32, i32) {
    %c0_i32 = arith.constant 0 : i32
    %c0_i32_0 = arith.constant 0 : i32
    %c0_i32_1 = arith.constant 0 : i32
    return %arg0, %c0_i32, %c0_i32_0, %arg1 : i32, i32, i32, i32
  }
}

</mosaic_0001>

<llo_original>
// kernel: wavelet_cnn1d_feature_extractor.1
$region0: #{wavelet_cnn1d_feature_extractor.1}
  #allocation0 [shape = 'u32[]', space=smem, size = 0x4, offset = 0x4, fixed_abs, tag = 'smem constant byte address 0x4 - core index']
  #allocation1 [shape = 'u32[144,128]{1,0:T(1,128)}', space=vmem, size = 0x12000, scoped, tag = 'internal scratch']
  %s0 = inlined_call_operand.vmem [shape: bf16[2,108,16], index: 0, kind: input, shape index: {}]
  %s1 = inlined_call_operand.vmem [shape: bf16[512,108], index: 1, kind: input, shape index: {}]
  %s2 = inlined_call_operand.vmem [shape: f32[512,1], index: 2, kind: input, shape index: {}]
  %s3 = inlined_call_operand.vmem [shape: bf16[768,108], index: 3, kind: input, shape index: {}]
  %s4 = inlined_call_operand.vmem [shape: f32[2,7,128,16], index: 4, kind: output, shape index: {}]
  %s5 = sld [smem:[#allocation0]]
  $region49: #{wavelet_cnn1d_feature_extractor.1} parent=0
    _
  %s7 = ssub.s32 1, %s5
  %s8 = scalar_select 0, %s7, %s5
  loop: start=0, step=1, limit=4
  $region2: #{wavelet_cnn1d_feature_extractor.1} parent=0 // loop_pre_header
    _
  $region3: #{wavelet_cnn1d_feature_extractor.1} parent=0 // loop_header
    %s10 = sphi 0, %s14
    %p11 = scmp.ge.s32.totalorder %s10, 4
    %s17 = sphi 0, %s29
    %s18 = sphi 0, %s25
    %s19 = sphi 0, %s17
    %s20 = sphi 0, %s18
    %s21 = sphi 0, %s19
    %s22 = sphi 0, %s20
    %s34 = sphi 0, %s36
    %s37 = sphi 0, %s34
    %s38 = sphi 0, %s37
    %s54 = sphi 0, %s38
    %s58 = sphi 0, %s58
    %s60 = sphi 0, %s58
    %s61 = sphi 0, %s60
    %s75 = sphi 0, %s61
    %s79 = sphi 0, %s79
    %s81 = sphi 0, %s79
    %s82 = sphi 0, %s81
    %s96 = sphi 0, %s82
    %s100 = sphi 0, %s100
    %s102 = sphi 0, %s100
    %s103 = sphi 0, %s102
    %s117 = sphi 0, %s103
    %s125 = sphi 0, %s127
    %s128 = sphi 0, %s125
    %s129 = sphi 0, %s128
    %s145 = sphi 0, %s129
  $region4: #{wavelet_cnn1d_feature_extractor.1} parent=0 // loop_header_branch
    %13 = sbr.rel (%p11) target = $region8
  $region5: #{wavelet_cnn1d_feature_extractor.1} parent=0 // loop_body
    %s15 = ssub.s32 %s10, 1
    %s16 = ssub.s32 %s10, 2
    %s23 = sadd.s32 1, %s18
    %p24 = scmp.ge.s32.totalorder %s23, 1
    %s25 = scalar_select %p24, 0, %s23
    %s26 = sadd.s32 1, %s17
    %s27 = scalar_select %p24, %s26, %s17
    %p28 = scmp.ge.s32.totalorder %s27, 2
    %s29 = scalar_select %p28, 0, %s27
    %s30 = ssub.s32 %s17, %s29
    %s31 = ssub.s32 %s18, %s25
    %s32 = sor.u32 %s30, %s31
    %p33 = scmp.eq.s32.totalorder %s32, 0
    %s35 = sadd.s32 %s34, 1
    %s36 = scalar_select %p33, %s34, %s35
    %p39 = pneg %p33
    %p40 = scmp.eq.s32.totalorder %s10, 1
    %p41 = por %p39, %p40
    %p42 = scmp.ne.s32.totalorder %s34, %s37
    %p43 = scmp.eq.s32.totalorder %s10, 0
    %p44 = por %p42, %p43
    %p45 = scmp.ne.s32.totalorder %s34, %s37
    %p46 = scmp.eq.s32.totalorder %s15, 1
    %p47 = por %p45, %p46
    %p48 = scmp.ne.s32.totalorder %s37, %s38
    %p49 = scmp.eq.s32.totalorder %s15, 0
    %p50 = por %p48, %p49
    %p51 = scmp.ne.s32.totalorder %s37, %s38
    %p52 = scmp.eq.s32.totalorder %s16, 1
    %p53 = por %p51, %p52
    %p55 = scmp.ne.s32.totalorder %s38, %s54
    %p56 = scmp.eq.s32.totalorder %s16, 0
    %p57 = por %p55, %p56
    %s59 = sadd.s32 %s58, 1
    %p62 = scmp.eq.s32.totalorder %s10, 1
    %p63 = scmp.ne.s32.totalorder %s58, %s60
    %p64 = scmp.eq.s32.totalorder %s10, 0
    %p65 = por %p63, %p64
    %p66 = scmp.ne.s32.totalorder %s58, %s60
    %p67 = scmp.eq.s32.totalorder %s15, 1
    %p68 = por %p66, %p67
    %p69 = scmp.ne.s32.totalorder %s60, %s61
    %p70 = scmp.eq.s32.totalorder %s15, 0
    %p71 = por %p69, %p70
    %p72 = scmp.ne.s32.totalorder %s60, %s61
    %p73 = scmp.eq.s32.totalorder %s16, 1
    %p74 = por %p72, %p73
    %p76 = scmp.ne.s32.totalorder %s61, %s75
    %p77 = scmp.eq.s32.totalorder %s16, 0
    %p78 = por %p76, %p77
    %s80 = sadd.s32 %s79, 1
    %p83 = scmp.eq.s32.totalorder %s10, 1
    %p84 = scmp.ne.s32.totalorder %s79, %s81
    %p85 = scmp.eq.s32.totalorder %s10, 0
    %p86 = por %p84, %p85
    %p87 = scmp.ne.s32.totalorder %s79, %s81
    %p88 = scmp.eq.s32.totalorder %s15, 1
    %p89 = por %p87, %p88
    %p90 = scmp.ne.s32.totalorder %s81, %s82
    %p91 = scmp.eq.s32.totalorder %s15, 0
    %p92 = por %p90, %p91
    %p93 = scmp.ne.s32.totalorder %s81, %s82
    %p94 = scmp.eq.s32.totalorder %s16, 1
    %p95 = por %p93, %p94
    %p97 = scmp.ne.s32.totalorder %s82, %s96
    %p98 = scmp.eq.s32.totalorder %s16, 0
    %p99 = por %p97, %p98
    %s101 = sadd.s32 %s100, 1
    %p104 = scmp.eq.s32.totalorder %s10, 1
    %p105 = scmp.ne.s32.totalorder %s100, %s102
    %p106 = scmp.eq.s32.totalorder %s10, 0
    %p107 = por %p105, %p106
    %p108 = scmp.ne.s32.totalorder %s100, %s102
    %p109 = scmp.eq.s32.totalorder %s15, 1
    %p110 = por %p108, %p109
    %p111 = scmp.ne.s32.totalorder %s102, %s103
    %p112 = scmp.eq.s32.totalorder %s15, 0
    %p113 = por %p111, %p112
    %p114 = scmp.ne.s32.totalorder %s102, %s103
    %p115 = scmp.eq.s32.totalorder %s16, 1
    %p116 = por %p114, %p115
    %p118 = scmp.ne.s32.totalorder %s103, %s117
    %p119 = scmp.eq.s32.totalorder %s16, 0
    %p120 = por %p118, %p119
    %s121 = ssub.s32 %s17, %s29
    %s122 = ssub.s32 %s18, %s25
    %s123 = sor.u32 %s121, %s122
    %p124 = scmp.eq.s32.totalorder %s123, 0
    %s126 = sadd.s32 %s125, 1
    %s127 = scalar_select %p124, %s125, %s126
    %p130 = pneg %p124
    %p131 = scmp.eq.s32.totalorder %s10, 1
    %p132 = por %p130, %p131
    %p133 = scmp.ne.s32.totalorder %s125, %s128
    %p134 = scmp.eq.s32.totalorder %s10, 0
    %p135 = por %p133, %p134
    %p136 = scmp.ne.s32.totalorder %s125, %s128
    %p137 = scmp.eq.s32.totalorder %s15, 1
    %p138 = por %p136, %p137
    %p139 = scmp.ne.s32.totalorder %s128, %s129
    %p140 = scmp.eq.s32.totalorder %s15, 0
    %p141 = por %p139, %p140
    %p142 = scmp.ne.s32.totalorder %s128, %s129
    %p143 = scmp.eq.s32.totalorder %s16, 1
    %p144 = por %p142, %p143
    %p146 = scmp.ne.s32.totalorder %s129, %s145
    %p147 = scmp.eq.s32.totalorder %s16, 0
    %p148 = por %p146, %p147
    %p149 = scmp.le.s32.totalorder 1, %s10
    %p150 = scmp.lt.s32.totalorder %s10, 3
    %p151 = pnand %p149, %p150
    %p152 = pneg %p151
    // Predicated region
    $region9: #{wavelet_cnn1d_feature_extractor.1} parent=5 // pred_check
      _
    $region10: #{wavelet_cnn1d_feature_extractor.1} parent=5 // pred_check_branch
      %154 = sbr.rel (%p151) target = $region12
    $region11: #{wavelet_cnn1d_feature_extractor.1} parent=5 // pred_region
      %s155 = ssub.s32 %s10, 1
      // Predicated region
      $region13: #{wavelet_cnn1d_feature_extractor.1} parent=11 // pred_check
        %p156 = pneg %p71
      $region14: #{wavelet_cnn1d_feature_extractor.1} parent=11 // pred_check_branch
        %158 = sbr.rel (%p156) target = $region16
      $region15: #{wavelet_cnn1d_feature_extractor.1} parent=11 // pred_region
        _
      $region16: #{wavelet_cnn1d_feature_extractor.1} parent=11 // pred_fallthru
        _
      // Predicated region
      $region17: #{wavelet_cnn1d_feature_extractor.1} parent=11 // pred_check
        %p159 = pneg %p92
      $region18: #{wavelet_cnn1d_feature_extractor.1} parent=11 // pred_check_branch
        %161 = sbr.rel (%p159) target = $region20
      $region19: #{wavelet_cnn1d_feature_extractor.1} parent=11 // pred_region
        _
      $region20: #{wavelet_cnn1d_feature_extractor.1} parent=11 // pred_fallthru
        _
      // Predicated region
      $region21: #{wavelet_cnn1d_feature_extractor.1} parent=11 // pred_check
        %p162 = pneg %p113
      $region22: #{wavelet_cnn1d_feature_extractor.1} parent=11 // pred_check_branch
        %164 = sbr.rel (%p162) target = $region24
      $region23: #{wavelet_cnn1d_feature_extractor.1} parent=11 // pred_region
        _
      $region24: #{wavelet_cnn1d_feature_extractor.1} parent=11 // pred_fallthru
        _
    $region12: #{wavelet_cnn1d_feature_extractor.1} parent=5 // pred_fallthru
      _
    %p165 = scmp.lt.s32.totalorder %s10, 2
    // Predicated region
    $region25: #{wavelet_cnn1d_feature_extractor.1} parent=5 // pred_check
      %p166 = pneg %p165
    $region26: #{wavelet_cnn1d_feature_extractor.1} parent=5 // pred_check_branch
      %168 = sbr.rel (%p166) target = $region28
    $region27: #{wavelet_cnn1d_feature_extractor.1} parent=5 // pred_region
      // Predicated region
      $region29: #{wavelet_cnn1d_feature_extractor.1} parent=27 // pred_check
        %p169 = pneg %p44
      $region30: #{wavelet_cnn1d_feature_extractor.1} parent=27 // pred_check_branch
        %171 = sbr.rel (%p169) target = $region32
      $region31: #{wavelet_cnn1d_feature_extractor.1} parent=27 // pred_region
        %p172 = scmp.lt.s32.totalorder %s17, 1
        %s173 = scalar_select %p172, %s17, 1
        %p174 = scmp.lt.s32.totalorder %s18, 0
        %s175 = scalar_select %p174, %s18, 0
        %s176 = smul.addr %s173, 14
        %s177 = sadd.s32 %s175, %s176
        %s178 = smul.addr %s177, 4
        %s179 = scalar_lea.vmem %s0, %s178
      $region32: #{wavelet_cnn1d_feature_extractor.1} parent=27 // pred_fallthru
        _
    $region28: #{wavelet_cnn1d_feature_extractor.1} parent=5 // pred_fallthru
      _
    %p180 = scmp.le.s32.totalorder 1, %s10
    %p181 = scmp.lt.s32.totalorder %s10, 3
    %p182 = pnand %p180, %p181
    %p183 = pneg %p182
    // Predicated region
    $region33: #{wavelet_cnn1d_feature_extractor.1} parent=5 // pred_check
      _
    $region34: #{wavelet_cnn1d_feature_extractor.1} parent=5 // pred_check_branch
      %185 = sbr.rel (%p182) target = $region36
    $region35: #{wavelet_cnn1d_feature_extractor.1} parent=5 // pred_region
      %s186 = ssub.s32 %s10, 1
      %p187 = scmp.lt.s32.totalorder %s19, 1
      %s188 = scalar_select %p187, %s19, 1
      %p189 = scmp.lt.s32.totalorder %s20, 0
      %s190 = scalar_select %p189, %s20, 0
      %s191 = smul.addr %s188, 14
      %s192 = sadd.s32 %s190, %s191
      %s193 = smul.addr %s192, 4
      %s194 = scalar_lea.vmem %s0, %s193
      %p195 = pneg %p50
      %p196 = pneg %p47
      %p197 = pneg %p71
      %p198 = pneg %p68
      %p199 = pneg %p92
      %p200 = pneg %p89
      %p201 = pneg %p113
      %p202 = pneg %p110
      %p203 = pneg %p141
      %p204 = pneg %p138
      %p205 = scmp.lt.s32.totalorder %s19, 1
      %s206 = scalar_select %p205, %s19, 1
      %p207 = scmp.lt.s32.totalorder %s20, 0
      %s208 = scalar_select %p207, %s20, 0
      %s209 = smul.addr %s206, 112
      %s210 = sadd.s32 %s208, %s209
      %s211 = smul.addr %s210, 8
      %s212 = scalar_lea.vmem %s4, %s211
      %p213 = scmp.lt.s32.totalorder %s19, 1
      %s214 = scalar_select %p213, %s19, 1
      %p215 = scmp.lt.s32.totalorder %s20, 0
      %s216 = scalar_select %p215, %s20, 0
      %s217 = smul.addr %s214, 14
      %s218 = sadd.s32 %s216, %s217
      %s219 = smul.addr %s218, 4
      %s220 = scalar_lea.vmem %s0, %s219
      %p221 = scmp.lt.s32.totalorder %s19, 1
      %s222 = scalar_select %p221, %s19, 1
      %p223 = scmp.lt.s32.totalorder %s20, 0
      %s224 = scalar_select %p223, %s20, 0
      %s225 = smul.addr %s222, 112
      %s226 = sadd.s32 %s224, %s225
      %s227 = smul.addr %s226, 8
      %s228 = scalar_lea.vmem %s4, %s227
      %v230 = vld [vmem:[%s220] sm:$0xf]
      %v231 = vld [vmem:[%s220 + $0x4] sm:$0xf]
      %v232 = vld [vmem:[%s220 + $0x8] sm:$0xf]
      %v233 = vld [vmem:[%s220 + $0xc] sm:$0xf]
      %v234 = vld [vmem:[%s220 + $0x10] sm:$0xf]
      %v235 = vld [vmem:[%s220 + $0x14] sm:$0xf]
      %v236 = vld [vmem:[%s220 + $0x18] sm:$0xf]
      %v237 = vld [vmem:[%s220 + $0x1c] sm:$0xf]
      %v238 = vld [vmem:[%s220 + $0x20] sm:$0xf]
      %v239 = vld [vmem:[%s220 + $0x24] sm:$0xf]
      %v240 = vld [vmem:[%s220 + $0x28] sm:$0xf]
      %v241 = vld [vmem:[%s220 + $0x2c] sm:$0xf]
      %v242 = vld [vmem:[%s220 + $0x30] sm:$0xf]
      %v243 = vld [vmem:[%s220 + $0x34] sm:$0x3]
      %v244 = vld [vmem:[%s1] sm:$0xf]
      %v245 = vld [vmem:[%s1 + $0x4] sm:$0xf]
      %v246 = vld [vmem:[%s1 + $0x8] sm:$0xf]
      %v247 = vld [vmem:[%s1 + $0xc] sm:$0xf]
      %v248 = vld [vmem:[%s1 + $0x10] sm:$0xf]
      %v249 = vld [vmem:[%s1 + $0x14] sm:$0xf]
      %v250 = vld [vmem:[%s1 + $0x18] sm:$0xf]
      %v251 = vld [vmem:[%s1 + $0x1c] sm:$0xf]
      %v252 = vld [vmem:[%s1 + $0x20] sm:$0xf]
      %v253 = vld [vmem:[%s1 + $0x24] sm:$0xf]
      %v254 = vld [vmem:[%s1 + $0x28] sm:$0xf]
      %v255 = vld [vmem:[%s1 + $0x2c] sm:$0xf]
      %v256 = vld [vmem:[%s1 + $0x30] sm:$0xf]
      %v257 = vld [vmem:[%s1 + $0x34] sm:$0xf]
      %v258 = vld [vmem:[%s1 + $0x38] sm:$0xf]
      %v259 = vld [vmem:[%s1 + $0x3c] sm:$0xf]
      %v260 = vld [vmem:[%s1 + $0x40] sm:$0xf]
      %v261 = vld [vmem:[%s1 + $0x44] sm:$0xf]
      %v262 = vld [vmem:[%s1 + $0x48] sm:$0xf]
      %v263 = vld [vmem:[%s1 + $0x4c] sm:$0xf]
      %v264 = vld [vmem:[%s1 + $0x50] sm:$0xf]
      %v265 = vld [vmem:[%s1 + $0x54] sm:$0xf]
      %v266 = vld [vmem:[%s1 + $0x58] sm:$0xf]
      %v267 = vld [vmem:[%s1 + $0x5c] sm:$0xf]
      %v268 = vld [vmem:[%s1 + $0x60] sm:$0xf]
      %v269 = vld [vmem:[%s1 + $0x64] sm:$0xf]
      %v270 = vld [vmem:[%s1 + $0x68] sm:$0xf]
      %v271 = vld [vmem:[%s1 + $0x6c] sm:$0xf]
      %v272 = vld [vmem:[%s1 + $0x70] sm:$0xf]
      %v273 = vld [vmem:[%s1 + $0x74] sm:$0xf]
      %v274 = vld [vmem:[%s1 + $0x78] sm:$0xf]
      %v275 = vld [vmem:[%s1 + $0x7c] sm:$0xf]
      %v276 = vld [vmem:[%s1 + $0x80] sm:$0xf]
      %v277 = vld [vmem:[%s1 + $0x84] sm:$0xf]
      %v278 = vld [vmem:[%s1 + $0x88] sm:$0xf]
      %v279 = vld [vmem:[%s1 + $0x8c] sm:$0xf]
      %v280 = vld [vmem:[%s1 + $0x90] sm:$0xf]
      %v281 = vld [vmem:[%s1 + $0x94] sm:$0xf]
      %v282 = vld [vmem:[%s1 + $0x98] sm:$0xf]
      %v283 = vld [vmem:[%s1 + $0x9c] sm:$0xf]
      %v284 = vld [vmem:[%s1 + $0xa0] sm:$0xf]
      %v285 = vld [vmem:[%s1 + $0xa4] sm:$0xf]
      %v286 = vld [vmem:[%s1 + $0xa8] sm:$0xf]
      %v287 = vld [vmem:[%s1 + $0xac] sm:$0xf]
      %v288 = vld [vmem:[%s1 + $0xb0] sm:$0xf]
      %v289 = vld [vmem:[%s1 + $0xb4] sm:$0xf]
      %v290 = vld [vmem:[%s1 + $0xb8] sm:$0xf]
      %v291 = vld [vmem:[%s1 + $0xbc] sm:$0xf]
      %v292 = vld [vmem:[%s1 + $0xc0] sm:$0xf]
      %v293 = vld [vmem:[%s1 + $0xc4] sm:$0xf]
      %v294 = vld [vmem:[%s1 + $0xc8] sm:$0xf]
      %v295 = vld [vmem:[%s1 + $0xcc] sm:$0xf]
      %v296 = vld [vmem:[%s1 + $0xd0] sm:$0xf]
      %v297 = vld [vmem:[%s1 + $0xd4] sm:$0xf]
      %v298 = vld [vmem:[%s1 + $0xd8] sm:$0xf]
      %v299 = vld [vmem:[%s1 + $0xdc] sm:$0xf]
      %v300 = vld [vmem:[%s1 + $0xe0] sm:$0xf]
      %v301 = vld [vmem:[%s1 + $0xe4] sm:$0xf]
      %v302 = vld [vmem:[%s1 + $0xe8] sm:$0xf]
      %v303 = vld [vmem:[%s1 + $0xec] sm:$0xf]
      %v304 = vld [vmem:[%s1 + $0xf0] sm:$0xf]
      %v305 = vld [vmem:[%s1 + $0xf4] sm:$0xf]
      %v306 = vld [vmem:[%s1 + $0xf8] sm:$0xf]
      %v307 = vld [vmem:[%s1 + $0xfc] sm:$0xf]
      %v308 = vld [vmem:[%s2] sm:$0xff]
      %v309 = vld [vmem:[%s2 + $0x8] sm:$0xff]
      %v310 = vld [vmem:[%s2 + $0x10] sm:$0xff]
      %v311 = vld [vmem:[%s2 + $0x18] sm:$0xff]
      %v312 = vld [vmem:[%s2 + $0x20] sm:$0xff]
      %v313 = vld [vmem:[%s2 + $0x28] sm:$0xff]
      %v314 = vld [vmem:[%s2 + $0x30] sm:$0xff]
      %v315 = vld [vmem:[%s2 + $0x38] sm:$0xff]
      %v316 = vld [vmem:[%s2 + $0x40] sm:$0xff]
      %v317 = vld [vmem:[%s2 + $0x48] sm:$0xff]
      %v318 = vld [vmem:[%s2 + $0x50] sm:$0xff]
      %v319 = vld [vmem:[%s2 + $0x58] sm:$0xff]
      %v320 = vld [vmem:[%s2 + $0x60] sm:$0xff]
      %v321 = vld [vmem:[%s2 + $0x68] sm:$0xff]
      %v322 = vld [vmem:[%s2 + $0x70] sm:$0xff]
      %v323 = vld [vmem:[%s2 + $0x78] sm:$0xff]
      %v324 = vld [vmem:[%s2 + $0x80] sm:$0xff]
      %v325 = vld [vmem:[%s2 + $0x88] sm:$0xff]
      %v326 = vld [vmem:[%s2 + $0x90] sm:$0xff]
      %v327 = vld [vmem:[%s2 + $0x98] sm:$0xff]
      %v328 = vld [vmem:[%s2 + $0xa0] sm:$0xff]
      %v329 = vld [vmem:[%s2 + $0xa8] sm:$0xff]
      %v330 = vld [vmem:[%s2 + $0xb0] sm:$0xff]
      %v331 = vld [vmem:[%s2 + $0xb8] sm:$0xff]
      %v332 = vld [vmem:[%s2 + $0xc0] sm:$0xff]
      %v333 = vld [vmem:[%s2 + $0xc8] sm:$0xff]
      %v334 = vld [vmem:[%s2 + $0xd0] sm:$0xff]
      %v335 = vld [vmem:[%s2 + $0xd8] sm:$0xff]
      %v336 = vld [vmem:[%s2 + $0xe0] sm:$0xff]
      %v337 = vld [vmem:[%s2 + $0xe8] sm:$0xff]
      %v338 = vld [vmem:[%s2 + $0xf0] sm:$0xff]
      %v339 = vld [vmem:[%s2 + $0xf8] sm:$0xff]
      %v340 = vld [vmem:[%s2 + $0x100] sm:$0xff]
      %v341 = vld [vmem:[%s2 + $0x108] sm:$0xff]
      %v342 = vld [vmem:[%s2 + $0x110] sm:$0xff]
      %v343 = vld [vmem:[%s2 + $0x118] sm:$0xff]
      %v344 = vld [vmem:[%s2 + $0x120] sm:$0xff]
      %v345 = vld [vmem:[%s2 + $0x128] sm:$0xff]
      %v346 = vld [vmem:[%s2 + $0x130] sm:$0xff]
      %v347 = vld [vmem:[%s2 + $0x138] sm:$0xff]
      %v348 = vld [vmem:[%s2 + $0x140] sm:$0xff]
      %v349 = vld [vmem:[%s2 + $0x148] sm:$0xff]
      %v350 = vld [vmem:[%s2 + $0x150] sm:$0xff]
      %v351 = vld [vmem:[%s2 + $0x158] sm:$0xff]
      %v352 = vld [vmem:[%s2 + $0x160] sm:$0xff]
      %v353 = vld [vmem:[%s2 + $0x168] sm:$0xff]
      %v354 = vld [vmem:[%s2 + $0x170] sm:$0xff]
      %v355 = vld [vmem:[%s2 + $0x178] sm:$0xff]
      %v356 = vld [vmem:[%s2 + $0x180] sm:$0xff]
      %v357 = vld [vmem:[%s2 + $0x188] sm:$0xff]
      %v358 = vld [vmem:[%s2 + $0x190] sm:$0xff]
      %v359 = vld [vmem:[%s2 + $0x198] sm:$0xff]
      %v360 = vld [vmem:[%s2 + $0x1a0] sm:$0xff]
      %v361 = vld [vmem:[%s2 + $0x1a8] sm:$0xff]
      %v362 = vld [vmem:[%s2 + $0x1b0] sm:$0xff]
      %v363 = vld [vmem:[%s2 + $0x1b8] sm:$0xff]
      %v364 = vld [vmem:[%s2 + $0x1c0] sm:$0xff]
      %v365 = vld [vmem:[%s2 + $0x1c8] sm:$0xff]
      %v366 = vld [vmem:[%s2 + $0x1d0] sm:$0xff]
      %v367 = vld [vmem:[%s2 + $0x1d8] sm:$0xff]
      %v368 = vld [vmem:[%s2 + $0x1e0] sm:$0xff]
      %v369 = vld [vmem:[%s2 + $0x1e8] sm:$0xff]
      %v370 = vld [vmem:[%s2 + $0x1f0] sm:$0xff]
      %v371 = vld [vmem:[%s2 + $0x1f8] sm:$0xff]
      %373 = vset.pattern.permute.xlu0 0
      %374 = vperm.xlu0 %373, %v308
      %v375 = vpop.permute.xlu0 %374
      %378 = vset.pattern.permute.xlu0 0
      %379 = vperm.xlu0 %378, %v309
      %v380 = vpop.permute.xlu0 %379
      %383 = vset.pattern.permute.xlu0 0
      %384 = vperm.xlu0 %383, %v310
      %v385 = vpop.permute.xlu0 %384
      %388 = vset.pattern.permute.xlu0 0
      %389 = vperm.xlu0 %388, %v311
      %v390 = vpop.permute.xlu0 %389
      %393 = vset.pattern.permute.xlu0 0
      %394 = vperm.xlu0 %393, %v312
      %v395 = vpop.permute.xlu0 %394
      %398 = vset.pattern.permute.xlu0 0
      %399 = vperm.xlu0 %398, %v313
      %v400 = vpop.permute.xlu0 %399
      %403 = vset.pattern.permute.xlu0 0
      %404 = vperm.xlu0 %403, %v314
      %v405 = vpop.permute.xlu0 %404
      %408 = vset.pattern.permute.xlu0 0
      %409 = vperm.xlu0 %408, %v315
      %v410 = vpop.permute.xlu0 %409
      %413 = vset.pattern.permute.xlu0 0
      %414 = vperm.xlu0 %413, %v316
      %v415 = vpop.permute.xlu0 %414
      %418 = vset.pattern.permute.xlu0 0
      %419 = vperm.xlu0 %418, %v317
      %v420 = vpop.permute.xlu0 %419
      %423 = vset.pattern.permute.xlu0 0
      %424 = vperm.xlu0 %423, %v318
      %v425 = vpop.permute.xlu0 %424
      %428 = vset.pattern.permute.xlu0 0
      %429 = vperm.xlu0 %428, %v319
      %v430 = vpop.permute.xlu0 %429
      %433 = vset.pattern.permute.xlu0 0
      %434 = vperm.xlu0 %433, %v320
      %v435 = vpop.permute.xlu0 %434
      %438 = vset.pattern.permute.xlu0 0
      %439 = vperm.xlu0 %438, %v321
      %v440 = vpop.permute.xlu0 %439
      %443 = vset.pattern.permute.xlu0 0
      %444 = vperm.xlu0 %443, %v322
      %v445 = vpop.permute.xlu0 %444
      %448 = vset.pattern.permute.xlu0 0
      %449 = vperm.xlu0 %448, %v323
      %v450 = vpop.permute.xlu0 %449
      %453 = vset.pattern.permute.xlu0 0
      %454 = vperm.xlu0 %453, %v324
      %v455 = vpop.permute.xlu0 %454
      %458 = vset.pattern.permute.xlu0 0
      %459 = vperm.xlu0 %458, %v325
      %v460 = vpop.permute.xlu0 %459
      %463 = vset.pattern.permute.xlu0 0
      %464 = vperm.xlu0 %463, %v326
      %v465 = vpop.permute.xlu0 %464
      %468 = vset.pattern.permute.xlu0 0
      %469 = vperm.xlu0 %468, %v327
      %v470 = vpop.permute.xlu0 %469
      %473 = vset.pattern.permute.xlu0 0
      %474 = vperm.xlu0 %473, %v328
      %v475 = vpop.permute.xlu0 %474
      %478 = vset.pattern.permute.xlu0 0
      %479 = vperm.xlu0 %478, %v329
      %v480 = vpop.permute.xlu0 %479
      %483 = vset.pattern.permute.xlu0 0
      %484 = vperm.xlu0 %483, %v330
      %v485 = vpop.permute.xlu0 %484
      %488 = vset.pattern.permute.xlu0 0
      %489 = vperm.xlu0 %488, %v331
      %v490 = vpop.permute.xlu0 %489
      %493 = vset.pattern.permute.xlu0 0
      %494 = vperm.xlu0 %493, %v332
      %v495 = vpop.permute.xlu0 %494
      %498 = vset.pattern.permute.xlu0 0
      %499 = vperm.xlu0 %498, %v333
      %v500 = vpop.permute.xlu0 %499
      %503 = vset.pattern.permute.xlu0 0
      %504 = vperm.xlu0 %503, %v334
      %v505 = vpop.permute.xlu0 %504
      %508 = vset.pattern.permute.xlu0 0
      %509 = vperm.xlu0 %508, %v335
      %v510 = vpop.permute.xlu0 %509
      %513 = vset.pattern.permute.xlu0 0
      %514 = vperm.xlu0 %513, %v336
      %v515 = vpop.permute.xlu0 %514
      %518 = vset.pattern.permute.xlu0 0
      %519 = vperm.xlu0 %518, %v337
      %v520 = vpop.permute.xlu0 %519
      %523 = vset.pattern.permute.xlu0 0
      %524 = vperm.xlu0 %523, %v338
      %v525 = vpop.permute.xlu0 %524
      %528 = vset.pattern.permute.xlu0 0
      %529 = vperm.xlu0 %528, %v339
      %v530 = vpop.permute.xlu0 %529
      %533 = vset.pattern.permute.xlu0 0
      %534 = vperm.xlu0 %533, %v340
      %v535 = vpop.permute.xlu0 %534
      %538 = vset.pattern.permute.xlu0 0
      %539 = vperm.xlu0 %538, %v341
      %v540 = vpop.permute.xlu0 %539
      %543 = vset.pattern.permute.xlu0 0
      %544 = vperm.xlu0 %543, %v342
      %v545 = vpop.permute.xlu0 %544
      %548 = vset.pattern.permute.xlu0 0
      %549 = vperm.xlu0 %548, %v343
      %v550 = vpop.permute.xlu0 %549
      %553 = vset.pattern.permute.xlu0 0
      %554 = vperm.xlu0 %553, %v344
      %v555 = vpop.permute.xlu0 %554
      %558 = vset.pattern.permute.xlu0 0
      %559 = vperm.xlu0 %558, %v345
      %v560 = vpop.permute.xlu0 %559
      %563 = vset.pattern.permute.xlu0 0
      %564 = vperm.xlu0 %563, %v346
      %v565 = vpop.permute.xlu0 %564
      %568 = vset.pattern.permute.xlu0 0
      %569 = vperm.xlu0 %568, %v347
      %v570 = vpop.permute.xlu0 %569
      %573 = vset.pattern.permute.xlu0 0
      %574 = vperm.xlu0 %573, %v348
      %v575 = vpop.permute.xlu0 %574
      %578 = vset.pattern.permute.xlu0 0
      %579 = vperm.xlu0 %578, %v349
      %v580 = vpop.permute.xlu0 %579
      %583 = vset.pattern.permute.xlu0 0
      %584 = vperm.xlu0 %583, %v350
      %v585 = vpop.permute.xlu0 %584
      %588 = vset.pattern.permute.xlu0 0
      %589 = vperm.xlu0 %588, %v351
      %v590 = vpop.permute.xlu0 %589
      %593 = vset.pattern.permute.xlu0 0
      %594 = vperm.xlu0 %593, %v352
      %v595 = vpop.permute.xlu0 %594
      %598 = vset.pattern.permute.xlu0 0
      %599 = vperm.xlu0 %598, %v353
      %v600 = vpop.permute.xlu0 %599
      %603 = vset.pattern.permute.xlu0 0
      %604 = vperm.xlu0 %603, %v354
      %v605 = vpop.permute.xlu0 %604
      %608 = vset.pattern.permute.xlu0 0
      %609 = vperm.xlu0 %608, %v355
      %v610 = vpop.permute.xlu0 %609
      %613 = vset.pattern.permute.xlu0 0
      %614 = vperm.xlu0 %613, %v356
      %v615 = vpop.permute.xlu0 %614
      %618 = vset.pattern.permute.xlu0 0
      %619 = vperm.xlu0 %618, %v357
      %v620 = vpop.permute.xlu0 %619
      %623 = vset.pattern.permute.xlu0 0
      %624 = vperm.xlu0 %623, %v358
      %v625 = vpop.permute.xlu0 %624
      %628 = vset.pattern.permute.xlu0 0
      %629 = vperm.xlu0 %628, %v359
      %v630 = vpop.permute.xlu0 %629
      %633 = vset.pattern.permute.xlu0 0
      %634 = vperm.xlu0 %633, %v360
      %v635 = vpop.permute.xlu0 %634
      %638 = vset.pattern.permute.xlu0 0
      %639 = vperm.xlu0 %638, %v361
      %v640 = vpop.permute.xlu0 %639
      %643 = vset.pattern.permute.xlu0 0
      %644 = vperm.xlu0 %643, %v362
      %v645 = vpop.permute.xlu0 %644
      %648 = vset.pattern.permute.xlu0 0
      %649 = vperm.xlu0 %648, %v363
      %v650 = vpop.permute.xlu0 %649
      %653 = vset.pattern.permute.xlu0 0
      %654 = vperm.xlu0 %653, %v364
      %v655 = vpop.permute.xlu0 %654
      %658 = vset.pattern.permute.xlu0 0
      %659 = vperm.xlu0 %658, %v365
      %v660 = vpop.permute.xlu0 %659
      %663 = vset.pattern.permute.xlu0 0
      %664 = vperm.xlu0 %663, %v366
      %v665 = vpop.permute.xlu0 %664
      %668 = vset.pattern.permute.xlu0 0
      %669 = vperm.xlu0 %668, %v367
      %v670 = vpop.permute.xlu0 %669
      %673 = vset.pattern.permute.xlu0 0
      %674 = vperm.xlu0 %673, %v368
      %v675 = vpop.permute.xlu0 %674
      %678 = vset.pattern.permute.xlu0 0
      %679 = vperm.xlu0 %678, %v369
      %v680 = vpop.permute.xlu0 %679
      %683 = vset.pattern.permute.xlu0 0
      %684 = vperm.xlu0 %683, %v370
      %v685 = vpop.permute.xlu0 %684
      %688 = vset.pattern.permute.xlu0 0
      %689 = vperm.xlu0 %688, %v371
      %v690 = vpop.permute.xlu0 %689
      %v756 = vunpack.c.l.b16 %v244
      %v757 = vunpack.c.l.b16 %v245
      %v758 = vunpack.c.l.b16 %v246
      %v759 = vunpack.c.l.b16 %v247
      %v760 = vunpack.c.l.b16 %v248
      %v761 = vunpack.c.l.b16 %v249
      %v762 = vunpack.c.l.b16 %v250
      %v763 = vunpack.c.l.b16 %v251
      %v764 = vunpack.c.l.b16 %v252
      %v765 = vunpack.c.l.b16 %v253
      %v766 = vunpack.c.l.b16 %v254
      %v767 = vunpack.c.l.b16 %v255
      %v768 = vunpack.c.l.b16 %v256
      %v769 = vunpack.c.l.b16 %v257
      %v770 = vunpack.c.l.b16 %v258
      %v771 = vunpack.c.l.b16 %v259
      %v772 = vunpack.c.l.b16 %v260
      %v773 = vunpack.c.l.b16 %v261
      %v774 = vunpack.c.l.b16 %v262
      %v775 = vunpack.c.l.b16 %v263
      %v776 = vunpack.c.l.b16 %v264
      %v777 = vunpack.c.l.b16 %v265
      %v778 = vunpack.c.l.b16 %v266
      %v779 = vunpack.c.l.b16 %v267
      %v780 = vunpack.c.l.b16 %v268
      %v781 = vunpack.c.l.b16 %v269
      %v782 = vunpack.c.l.b16 %v270
      %v783 = vunpack.c.l.b16 %v271
      %v784 = vunpack.c.l.b16 %v272
      %v785 = vunpack.c.l.b16 %v273
      %v786 = vunpack.c.l.b16 %v274
      %v787 = vunpack.c.l.b16 %v275
      %v788 = vunpack.c.l.b16 %v276
      %v789 = vunpack.c.l.b16 %v277
      %v790 = vunpack.c.l.b16 %v278
      %v791 = vunpack.c.l.b16 %v279
      %v792 = vunpack.c.l.b16 %v280
      %v793 = vunpack.c.l.b16 %v281
      %v794 = vunpack.c.l.b16 %v282
      %v795 = vunpack.c.l.b16 %v283
      %v796 = vunpack.c.l.b16 %v284
      %v797 = vunpack.c.l.b16 %v285
      %v798 = vunpack.c.l.b16 %v286
      %v799 = vunpack.c.l.b16 %v287
      %v800 = vunpack.c.l.b16 %v288
      %v801 = vunpack.c.l.b16 %v289
      %v802 = vunpack.c.l.b16 %v290
      %v803 = vunpack.c.l.b16 %v291
      %v804 = vunpack.c.l.b16 %v292
      %v805 = vunpack.c.l.b16 %v293
      %v806 = vunpack.c.l.b16 %v294
      %v807 = vunpack.c.l.b16 %v295
      %v808 = vunpack.c.l.b16 %v296
      %v809 = vunpack.c.l.b16 %v297
      %v810 = vunpack.c.l.b16 %v298
      %v811 = vunpack.c.l.b16 %v299
      %v812 = vunpack.c.l.b16 %v300
      %v813 = vunpack.c.l.b16 %v301
      %v814 = vunpack.c.l.b16 %v302
      %v815 = vunpack.c.l.b16 %v303
      %v816 = vunpack.c.l.b16 %v304
      %v817 = vunpack.c.l.b16 %v305
      %v818 = vunpack.c.l.b16 %v306
      %v819 = vunpack.c.l.b16 %v307
      %v820 = vpack.c.b16 %v757, %v756
      %v821 = vpack.c.b16 %v759, %v758
      %v822 = vpack.c.b16 %v761, %v760
      %v823 = vpack.c.b16 %v763, %v762
      %v824 = vpack.c.b16 %v765, %v764
      %v825 = vpack.c.b16 %v767, %v766
      %v826 = vpack.c.b16 %v769, %v768
      %v827 = vpack.c.b16 %v771, %v770
      %v828 = vpack.c.b16 %v773, %v772
      %v829 = vpack.c.b16 %v775, %v774
      %v830 = vpack.c.b16 %v777, %v776
      %v831 = vpack.c.b16 %v779, %v778
      %v832 = vpack.c.b16 %v781, %v780
      %v833 = vpack.c.b16 %v783, %v782
      %v834 = vpack.c.b16 %v785, %v784
      %v835 = vpack.c.b16 %v787, %v786
      %v836 = vpack.c.b16 %v789, %v788
      %v837 = vpack.c.b16 %v791, %v790
      %v838 = vpack.c.b16 %v793, %v792
      %v839 = vpack.c.b16 %v795, %v794
      %v840 = vpack.c.b16 %v797, %v796
      %v841 = vpack.c.b16 %v799, %v798
      %v842 = vpack.c.b16 %v801, %v800
      %v843 = vpack.c.b16 %v803, %v802
      %v844 = vpack.c.b16 %v805, %v804
      %v845 = vpack.c.b16 %v807, %v806
      %v846 = vpack.c.b16 %v809, %v808
      %v847 = vpack.c.b16 %v811, %v810
      %v848 = vpack.c.b16 %v813, %v812
      %v849 = vpack.c.b16 %v815, %v814
      %v850 = vpack.c.b16 %v817, %v816
      %v851 = vpack.c.b16 %v819, %v818
      %v866 = vunpack.c.l.b16 %v230
      %v867 = vunpack.c.l.b16 %v231
      %v868 = vunpack.c.l.b16 %v232
      %v869 = vunpack.c.l.b16 %v233
      %v870 = vunpack.c.l.b16 %v234
      %v871 = vunpack.c.l.b16 %v235
      %v872 = vunpack.c.l.b16 %v236
      %v873 = vunpack.c.l.b16 %v237
      %v874 = vunpack.c.l.b16 %v238
      %v875 = vunpack.c.l.b16 %v239
      %v876 = vunpack.c.l.b16 %v240
      %v877 = vunpack.c.l.b16 %v241
      %v878 = vunpack.c.l.b16 %v242
      %v879 = vunpack.c.l.b16 %v243
      %v880 = vpack.c.b16 %v867, %v866
      %v881 = vpack.c.b16 %v869, %v868
      %v882 = vpack.c.b16 %v871, %v870
      %v883 = vpack.c.b16 %v873, %v872
      %v884 = vpack.c.b16 %v875, %v874
      %v885 = vpack.c.b16 %v877, %v876
      %v886 = vpack.c.b16 %v879, %v878
      %vm893 = vcmask 883712
      %v895 = vsel %vm893, %v820, 0
      %v898 = vsel %vm893, %v821, 0
      %v901 = vsel %vm893, %v822, 0
      %v904 = vsel %vm893, %v823, 0
      %v907 = vsel %vm893, %v824, 0
      %v910 = vsel %vm893, %v825, 0
      %v913 = vsel %vm893, %v826, 0
      %v916 = vsel %vm893, %v827, 0
      %v919 = vsel %vm893, %v828, 0
      %v922 = vsel %vm893, %v829, 0
      %v925 = vsel %vm893, %v830, 0
      %v928 = vsel %vm893, %v831, 0
      %v931 = vsel %vm893, %v832, 0
      %v934 = vsel %vm893, %v833, 0
      %v937 = vsel %vm893, %v834, 0
      %v940 = vsel %vm893, %v835, 0
      %v943 = vsel %vm893, %v836, 0
      %v946 = vsel %vm893, %v837, 0
      %v949 = vsel %vm893, %v838, 0
      %v952 = vsel %vm893, %v839, 0
      %v955 = vsel %vm893, %v840, 0
      %v958 = vsel %vm893, %v841, 0
      %v961 = vsel %vm893, %v842, 0
      %v964 = vsel %vm893, %v843, 0
      %v967 = vsel %vm893, %v844, 0
      %v970 = vsel %vm893, %v845, 0
      %v973 = vsel %vm893, %v846, 0
      %v976 = vsel %vm893, %v847, 0
      %v979 = vsel %vm893, %v848, 0
      %v982 = vsel %vm893, %v849, 0
      %v985 = vsel %vm893, %v850, 0
      %v988 = vsel %vm893, %v851, 0
      %vm990 = vcmask 1045504
      %v992 = vsel %vm990, %v886, 0
      %994 = vmatprep.subr.bf16.mxu0 0
      %995 = vmatpush1.bf16.msra.mxu0 0
      %996 = vmatprep.subr.bf16.mxu0 0
      %997 = vmatpush1.bf16.msra.mxu0 %v992
      %998 = vmatprep.subr.bf16.mxu0 0
      %999 = vmatpush1.bf16.msra.mxu0 %v885
      %1000 = vmatprep.subr.bf16.mxu0 0
      %1001 = vmatpush1.bf16.msra.mxu0 %v884
      %1002 = vmatprep.subr.bf16.mxu0 0
      %1003 = vmatpush1.bf16.msra.mxu0 %v883
      %1004 = vmatprep.subr.bf16.mxu0 0
      %1005 = vmatpush1.bf16.msra.mxu0 %v882
      %1006 = vmatprep.subr.bf16.mxu0 0
      %1007 = vmatpush1.bf16.msra.mxu0 %v881
      %1008 = vmatprep.subr.bf16.mxu0 0
      %1009 = vmatpush1.bf16.msra.mxu0 %v880
      %1010 = vmatprep.subr.bf16.mxu0 0
      %1011 = vmatpush2.bf16.msra.mxu0 0
      %1012 = vmatprep.subr.bf16.mxu0 0
      %1013 = vmatpush2.bf16.msra.mxu0 0
      %1014 = vmatprep.subr.bf16.mxu0 0
      %1015 = vmatpush2.bf16.msra.mxu0 0
      %1016 = vmatprep.subr.bf16.mxu0 0
      %1017 = vmatpush2.bf16.msra.mxu0 0
      %1018 = vmatprep.subr.bf16.mxu0 0
      %1019 = vmatpush2.bf16.msra.mxu0 0
      %1020 = vmatprep.subr.bf16.mxu0 0
      %1021 = vmatpush2.bf16.msra.mxu0 0
      %1022 = vmatprep.subr.bf16.mxu0 0
      %1023 = vmatpush2.bf16.msra.mxu0 0
      %1024 = vmatprep.subr.bf16.mxu0 0
      %1025 = vmatpush2.bf16.msra.mxu0 0
      %1026 = vmatprep.mubr.bf16.mxu0 0
      %1027 = vmatmul.mubr.bf16.gmra.mxu0 %v895
      %v1028 = vpop.f32.mrf.mxu0
      %v1029 = vadd.f32 %v375, %v1028
      %v1030 = vpop.f32.mrf.mxu0
      %v1031 = vpop.f32.mrf.mxu0
      %v1032 = vadd.f32 %v380, %v1031
      %v1033 = vpop.f32.mrf.mxu0
      %1034 = vmatprep.mubr.bf16.mxu0 0
      %1035 = vmatmul.mubr.bf16.gmra.mxu0 %v898
      %v1036 = vpop.f32.mrf.mxu0
      %v1037 = vadd.f32 %v385, %v1036
      %v1038 = vpop.f32.mrf.mxu0
      %v1039 = vpop.f32.mrf.mxu0
      %v1040 = vadd.f32 %v390, %v1039
      %v1041 = vpop.f32.mrf.mxu0
      %1042 = vmatprep.mubr.bf16.mxu0 0
      %1043 = vmatmul.mubr.bf16.gmra.mxu0 %v901
      %v1044 = vpop.f32.mrf.mxu0
      %v1045 = vadd.f32 %v395, %v1044
      %v1046 = vpop.f32.mrf.mxu0
      %v1047 = vpop.f32.mrf.mxu0
      %v1048 = vadd.f32 %v400, %v1047
      %v1049 = vpop.f32.mrf.mxu0
      %1050 = vmatprep.mubr.bf16.mxu0 0
      %1051 = vmatmul.mubr.bf16.gmra.mxu0 %v904
      %v1052 = vpop.f32.mrf.mxu0
      %v1053 = vadd.f32 %v405, %v1052
      %v1054 = vpop.f32.mrf.mxu0
      %v1055 = vpop.f32.mrf.mxu0
      %v1056 = vadd.f32 %v410, %v1055
      %v1057 = vpop.f32.mrf.mxu0
      %1058 = vmatprep.mubr.bf16.mxu0 0
      %1059 = vmatmul.mubr.bf16.gmra.mxu0 %v907
      %v1060 = vpop.f32.mrf.mxu0
      %v1061 = vadd.f32 %v415, %v1060
      %v1062 = vpop.f32.mrf.mxu0
      %v1063 = vpop.f32.mrf.mxu0
      %v1064 = vadd.f32 %v420, %v1063
      %v1065 = vpop.f32.mrf.mxu0
      %1066 = vmatprep.mubr.bf16.mxu0 0
      %1067 = vmatmul.mubr.bf16.gmra.mxu0 %v910
      %v1068 = vpop.f32.mrf.mxu0
      %v1069 = vadd.f32 %v425, %v1068
      %v1070 = vpop.f32.mrf.mxu0
      %v1071 = vpop.f32.mrf.mxu0
      %v1072 = vadd.f32 %v430, %v1071
      %v1073 = vpop.f32.mrf.mxu0
      %1074 = vmatprep.mubr.bf16.mxu0 0
      %1075 = vmatmul.mubr.bf16.gmra.mxu0 %v913
      %v1076 = vpop.f32.mrf.mxu0
      %v1077 = vadd.f32 %v435, %v1076
      %v1078 = vpop.f32.mrf.mxu0
      %v1079 = vpop.f32.mrf.mxu0
      %v1080 = vadd.f32 %v440, %v1079
      %v1081 = vpop.f32.mrf.mxu0
      %1082 = vmatprep.mubr.bf16.mxu0 0
      %1083 = vmatmul.mubr.bf16.gmra.mxu0 %v916
      %v1084 = vpop.f32.mrf.mxu0
      %v1085 = vadd.f32 %v445, %v1084
      %v1086 = vpop.f32.mrf.mxu0
      %v1087 = vpop.f32.mrf.mxu0
      %v1088 = vadd.f32 %v450, %v1087
      %v1089 = vpop.f32.mrf.mxu0
      %1090 = vmatprep.mubr.bf16.mxu0 0
      %1091 = vmatmul.mubr.bf16.gmra.mxu0 %v919
      %v1092 = vpop.f32.mrf.mxu0
      %v1093 = vadd.f32 %v455, %v1092
      %v1094 = vpop.f32.mrf.mxu0
      %v1095 = vpop.f32.mrf.mxu0
      %v1096 = vadd.f32 %v460, %v1095
      %v1097 = vpop.f32.mrf.mxu0
      %1098 = vmatprep.mubr.bf16.mxu0 0
      %1099 = vmatmul.mubr.bf16.gmra.mxu0 %v922
      %v1100 = vpop.f32.mrf.mxu0
      %v1101 = vadd.f32 %v465, %v1100
      %v1102 = vpop.f32.mrf.mxu0
      %v1103 = vpop.f32.mrf.mxu0
      %v1104 = vadd.f32 %v470, %v1103
      %v1105 = vpop.f32.mrf.mxu0
      %1106 = vmatprep.mubr.bf16.mxu0 0
      %1107 = vmatmul.mubr.bf16.gmra.mxu0 %v925
      %v1108 = vpop.f32.mrf.mxu0
      %v1109 = vadd.f32 %v475, %v1108
      %v1110 = vpop.f32.mrf.mxu0
      %v1111 = vpop.f32.mrf.mxu0
      %v1112 = vadd.f32 %v480, %v1111
      %v1113 = vpop.f32.mrf.mxu0
      %1114 = vmatprep.mubr.bf16.mxu0 0
      %1115 = vmatmul.mubr.bf16.gmra.mxu0 %v928
      %v1116 = vpop.f32.mrf.mxu0
      %v1117 = vadd.f32 %v485, %v1116
      %v1118 = vpop.f32.mrf.mxu0
      %v1119 = vpop.f32.mrf.mxu0
      %v1120 = vadd.f32 %v490, %v1119
      %v1121 = vpop.f32.mrf.mxu0
      %1122 = vmatprep.mubr.bf16.mxu0 0
      %1123 = vmatmul.mubr.bf16.gmra.mxu0 %v931
      %v1124 = vpop.f32.mrf.mxu0
      %v1125 = vadd.f32 %v495, %v1124
      %v1126 = vpop.f32.mrf.mxu0
      %v1127 = vpop.f32.mrf.mxu0
      %v1128 = vadd.f32 %v500, %v1127
      %v1129 = vpop.f32.mrf.mxu0
      %1130 = vmatprep.mubr.bf16.mxu0 0
      %1131 = vmatmul.mubr.bf16.gmra.mxu0 %v934
      %v1132 = vpop.f32.mrf.mxu0
      %v1133 = vadd.f32 %v505, %v1132
      %v1134 = vpop.f32.mrf.mxu0
      %v1135 = vpop.f32.mrf.mxu0
      %v1136 = vadd.f32 %v510, %v1135
      %v1137 = vpop.f32.mrf.mxu0
      %1138 = vmatprep.mubr.bf16.mxu0 0
      %1139 = vmatmul.mubr.bf16.gmra.mxu0 %v937
      %v1140 = vpop.f32.mrf.mxu0
      %v1141 = vadd.f32 %v515, %v1140
      %v1142 = vpop.f32.mrf.mxu0
      %v1143 = vpop.f32.mrf.mxu0
      %v1144 = vadd.f32 %v520, %v1143
      %v1145 = vpop.f32.mrf.mxu0
      %1146 = vmatprep.mubr.bf16.mxu0 0
      %1147 = vmatmul.mubr.bf16.gmra.mxu0 %v940
      %v1148 = vpop.f32.mrf.mxu0
      %v1149 = vadd.f32 %v525, %v1148
      %v1150 = vpop.f32.mrf.mxu0
      %v1151 = vpop.f32.mrf.mxu0
      %v1152 = vadd.f32 %v530, %v1151
      %v1153 = vpop.f32.mrf.mxu0
      %1154 = vmatprep.mubr.bf16.mxu0 0
      %1155 = vmatmul.mubr.bf16.gmra.mxu0 %v943
      %v1156 = vpop.f32.mrf.mxu0
      %v1157 = vadd.f32 %v535, %v1156
      %v1158 = vpop.f32.mrf.mxu0
      %v1159 = vpop.f32.mrf.mxu0
      %v1160 = vadd.f32 %v540, %v1159
      %v1161 = vpop.f32.mrf.mxu0
      %1162 = vmatprep.mubr.bf16.mxu0 0
      %1163 = vmatmul.mubr.bf16.gmra.mxu0 %v946
      %v1164 = vpop.f32.mrf.mxu0
      %v1165 = vadd.f32 %v545, %v1164
      %v1166 = vpop.f32.mrf.mxu0
      %v1167 = vpop.f32.mrf.mxu0
      %v1168 = vadd.f32 %v550, %v1167
      %v1169 = vpop.f32.mrf.mxu0
      %1170 = vmatprep.mubr.bf16.mxu0 0
      %1171 = vmatmul.mubr.bf16.gmra.mxu0 %v949
      %v1172 = vpop.f32.mrf.mxu0
      %v1173 = vadd.f32 %v555, %v1172
      %v1174 = vpop.f32.mrf.mxu0
      %v1175 = vpop.f32.mrf.mxu0
      %v1176 = vadd.f32 %v560, %v1175
      %v1177 = vpop.f32.mrf.mxu0
      %1178 = vmatprep.mubr.bf16.mxu0 0
      %1179 = vmatmul.mubr.bf16.gmra.mxu0 %v952
      %v1180 = vpop.f32.mrf.mxu0
      %v1181 = vadd.f32 %v565, %v1180
      %v1182 = vpop.f32.mrf.mxu0
      %v1183 = vpop.f32.mrf.mxu0
      %v1184 = vadd.f32 %v570, %v1183
      %v1185 = vpop.f32.mrf.mxu0
      %1186 = vmatprep.mubr.bf16.mxu0 0
      %1187 = vmatmul.mubr.bf16.gmra.mxu0 %v955
      %v1188 = vpop.f32.mrf.mxu0
      %v1189 = vadd.f32 %v575, %v1188
      %v1190 = vpop.f32.mrf.mxu0
      %v1191 = vpop.f32.mrf.mxu0
      %v1192 = vadd.f32 %v580, %v1191
      %v1193 = vpop.f32.mrf.mxu0
      %1194 = vmatprep.mubr.bf16.mxu0 0
      %1195 = vmatmul.mubr.bf16.gmra.mxu0 %v958
      %v1196 = vpop.f32.mrf.mxu0
      %v1197 = vadd.f32 %v585, %v1196
      %v1198 = vpop.f32.mrf.mxu0
      %v1199 = vpop.f32.mrf.mxu0
      %v1200 = vadd.f32 %v590, %v1199
      %v1201 = vpop.f32.mrf.mxu0
      %1202 = vmatprep.mubr.bf16.mxu0 0
      %1203 = vmatmul.mubr.bf16.gmra.mxu0 %v961
      %v1204 = vpop.f32.mrf.mxu0
      %v1205 = vadd.f32 %v595, %v1204
      %v1206 = vpop.f32.mrf.mxu0
      %v1207 = vpop.f32.mrf.mxu0
      %v1208 = vadd.f32 %v600, %v1207
      %v1209 = vpop.f32.mrf.mxu0
      %1210 = vmatprep.mubr.bf16.mxu0 0
      %1211 = vmatmul.mubr.bf16.gmra.mxu0 %v964
      %v1212 = vpop.f32.mrf.mxu0
      %v1213 = vadd.f32 %v605, %v1212
      %v1214 = vpop.f32.mrf.mxu0
      %v1215 = vpop.f32.mrf.mxu0
      %v1216 = vadd.f32 %v610, %v1215
      %v1217 = vpop.f32.mrf.mxu0
      %1218 = vmatprep.mubr.bf16.mxu0 0
      %1219 = vmatmul.mubr.bf16.gmra.mxu0 %v967
      %v1220 = vpop.f32.mrf.mxu0
      %v1221 = vadd.f32 %v615, %v1220
      %v1222 = vpop.f32.mrf.mxu0
      %v1223 = vpop.f32.mrf.mxu0
      %v1224 = vadd.f32 %v620, %v1223
      %v1225 = vpop.f32.mrf.mxu0
      %1226 = vmatprep.mubr.bf16.mxu0 0
      %1227 = vmatmul.mubr.bf16.gmra.mxu0 %v970
      %v1228 = vpop.f32.mrf.mxu0
      %v1229 = vadd.f32 %v625, %v1228
      %v1230 = vpop.f32.mrf.mxu0
      %v1231 = vpop.f32.mrf.mxu0
      %v1232 = vadd.f32 %v630, %v1231
      %v1233 = vpop.f32.mrf.mxu0
      %1234 = vmatprep.mubr.bf16.mxu0 0
      %1235 = vmatmul.mubr.bf16.gmra.mxu0 %v973
      %v1236 = vpop.f32.mrf.mxu0
      %v1237 = vadd.f32 %v635, %v1236
      %v1238 = vpop.f32.mrf.mxu0
      %v1239 = vpop.f32.mrf.mxu0
      %v1240 = vadd.f32 %v640, %v1239
      %v1241 = vpop.f32.mrf.mxu0
      %1242 = vmatprep.mubr.bf16.mxu0 0
      %1243 = vmatmul.mubr.bf16.gmra.mxu0 %v976
      %v1244 = vpop.f32.mrf.mxu0
      %v1245 = vadd.f32 %v645, %v1244
      %v1246 = vpop.f32.mrf.mxu0
      %v1247 = vpop.f32.mrf.mxu0
      %v1248 = vadd.f32 %v650, %v1247
      %v1249 = vpop.f32.mrf.mxu0
      %1250 = vmatprep.mubr.bf16.mxu0 0
      %1251 = vmatmul.mubr.bf16.gmra.mxu0 %v979
      %v1252 = vpop.f32.mrf.mxu0
      %v1253 = vadd.f32 %v655, %v1252
      %v1254 = vpop.f32.mrf.mxu0
      %v1255 = vpop.f32.mrf.mxu0
      %v1256 = vadd.f32 %v660, %v1255
      %v1257 = vpop.f32.mrf.mxu0
      %1258 = vmatprep.mubr.bf16.mxu0 0
      %1259 = vmatmul.mubr.bf16.gmra.mxu0 %v982
      %v1260 = vpop.f32.mrf.mxu0
      %v1261 = vadd.f32 %v665, %v1260
      %v1262 = vpop.f32.mrf.mxu0
      %v1263 = vpop.f32.mrf.mxu0
      %v1264 = vadd.f32 %v670, %v1263
      %v1265 = vpop.f32.mrf.mxu0
      %1266 = vmatprep.mubr.bf16.mxu0 0
      %1267 = vmatmul.mubr.bf16.gmra.mxu0 %v985
      %v1268 = vpop.f32.mrf.mxu0
      %v1269 = vadd.f32 %v675, %v1268
      %v1270 = vpop.f32.mrf.mxu0
      %v1271 = vpop.f32.mrf.mxu0
      %v1272 = vadd.f32 %v680, %v1271
      %v1273 = vpop.f32.mrf.mxu0
      %1274 = vmatprep.mubr.bf16.mxu0 0
      %1275 = vmatmul.mubr.bf16.gmra.mxu0 %v988
      %v1276 = vpop.f32.mrf.mxu0
      %v1277 = vadd.f32 %v685, %v1276
      %v1278 = vpop.f32.mrf.mxu0
      %v1279 = vpop.f32.mrf.mxu0
      %v1280 = vadd.f32 %v690, %v1279
      %v1281 = vpop.f32.mrf.mxu0
      %1282 = vdwg.mxu0
      %v1283 = vld [vmem:[%s3] sm:$0xf]
      %v1284 = vld [vmem:[%s3 + $0x4] sm:$0xf]
      %v1285 = vld [vmem:[%s3 + $0x8] sm:$0xf]
      %v1286 = vld [vmem:[%s3 + $0xc] sm:$0xf]
      %v1287 = vld [vmem:[%s3 + $0x10] sm:$0xf]
      %v1288 = vld [vmem:[%s3 + $0x14] sm:$0xf]
      %v1289 = vld [vmem:[%s3 + $0x18] sm:$0xf]
      %v1290 = vld [vmem:[%s3 + $0x1c] sm:$0xf]
      %v1291 = vld [vmem:[%s3 + $0x20] sm:$0xf]
      %v1292 = vld [vmem:[%s3 + $0x24] sm:$0xf]
      %v1293 = vld [vmem:[%s3 + $0x28] sm:$0xf]
      %v1294 = vld [vmem:[%s3 + $0x2c] sm:$0xf]
      %v1295 = vld [vmem:[%s3 + $0x30] sm:$0xf]
      %v1296 = vld [vmem:[%s3 + $0x34] sm:$0xf]
      %v1297 = vld [vmem:[%s3 + $0x38] sm:$0xf]
      %v1298 = vld [vmem:[%s3 + $0x3c] sm:$0xf]
      %v1299 = vld [vmem:[%s3 + $0x40] sm:$0xf]
      %v1300 = vld [vmem:[%s3 + $0x44] sm:$0xf]
      %v1301 = vld [vmem:[%s3 + $0x48] sm:$0xf]
      %v1302 = vld [vmem:[%s3 + $0x4c] sm:$0xf]
      %v1303 = vld [vmem:[%s3 + $0x50] sm:$0xf]
      %v1304 = vld [vmem:[%s3 + $0x54] sm:$0xf]
      %v1305 = vld [vmem:[%s3 + $0x58] sm:$0xf]
      %v1306 = vld [vmem:[%s3 + $0x5c] sm:$0xf]
      %v1307 = vld [vmem:[%s3 + $0x60] sm:$0xf]
      %v1308 = vld [vmem:[%s3 + $0x64] sm:$0xf]
      %v1309 = vld [vmem:[%s3 + $0x68] sm:$0xf]
      %v1310 = vld [vmem:[%s3 + $0x6c] sm:$0xf]
      %v1311 = vld [vmem:[%s3 + $0x70] sm:$0xf]
      %v1312 = vld [vmem:[%s3 + $0x74] sm:$0xf]
      %v1313 = vld [vmem:[%s3 + $0x78] sm:$0xf]
      %v1314 = vld [vmem:[%s3 + $0x7c] sm:$0xf]
      %v1315 = vld [vmem:[%s3 + $0x80] sm:$0xf]
      %v1316 = vld [vmem:[%s3 + $0x84] sm:$0xf]
      %v1317 = vld [vmem:[%s3 + $0x88] sm:$0xf]
      %v1318 = vld [vmem:[%s3 + $0x8c] sm:$0xf]
      %v1319 = vld [vmem:[%s3 + $0x90] sm:$0xf]
      %v1320 = vld [vmem:[%s3 + $0x94] sm:$0xf]
      %v1321 = vld [vmem:[%s3 + $0x98] sm:$0xf]
      %v1322 = vld [vmem:[%s3 + $0x9c] sm:$0xf]
      %v1323 = vld [vmem:[%s3 + $0xa0] sm:$0xf]
      %v1324 = vld [vmem:[%s3 + $0xa4] sm:$0xf]
      %v1325 = vld [vmem:[%s3 + $0xa8] sm:$0xf]
      %v1326 = vld [vmem:[%s3 + $0xac] sm:$0xf]
      %v1327 = vld [vmem:[%s3 + $0xb0] sm:$0xf]
      %v1328 = vld [vmem:[%s3 + $0xb4] sm:$0xf]
      %v1329 = vld [vmem:[%s3 + $0xb8] sm:$0xf]
      %v1330 = vld [vmem:[%s3 + $0xbc] sm:$0xf]
      %v1331 = vld [vmem:[%s3 + $0xc0] sm:$0xf]
      %v1332 = vld [vmem:[%s3 + $0xc4] sm:$0xf]
      %v1333 = vld [vmem:[%s3 + $0xc8] sm:$0xf]
      %v1334 = vld [vmem:[%s3 + $0xcc] sm:$0xf]
      %v1335 = vld [vmem:[%s3 + $0xd0] sm:$0xf]
      %v1336 = vld [vmem:[%s3 + $0xd4] sm:$0xf]
      %v1337 = vld [vmem:[%s3 + $0xd8] sm:$0xf]
      %v1338 = vld [vmem:[%s3 + $0xdc] sm:$0xf]
      %v1339 = vld [vmem:[%s3 + $0xe0] sm:$0xf]
      %v1340 = vld [vmem:[%s3 + $0xe4] sm:$0xf]
      %v1341 = vld [vmem:[%s3 + $0xe8] sm:$0xf]
      %v1342 = vld [vmem:[%s3 + $0xec] sm:$0xf]
      %v1343 = vld [vmem:[%s3 + $0xf0] sm:$0xf]
      %v1344 = vld [vmem:[%s3 + $0xf4] sm:$0xf]
      %v1345 = vld [vmem:[%s3 + $0xf8] sm:$0xf]
      %v1346 = vld [vmem:[%s3 + $0xfc] sm:$0xf]
      %v1347 = vld [vmem:[%s3 + $0x100] sm:$0xf]
      %v1348 = vld [vmem:[%s3 + $0x104] sm:$0xf]
      %v1349 = vld [vmem:[%s3 + $0x108] sm:$0xf]
      %v1350 = vld [vmem:[%s3 + $0x10c] sm:$0xf]
      %v1351 = vld [vmem:[%s3 + $0x110] sm:$0xf]
      %v1352 = vld [vmem:[%s3 + $0x114] sm:$0xf]
      %v1353 = vld [vmem:[%s3 + $0x118] sm:$0xf]
      %v1354 = vld [vmem:[%s3 + $0x11c] sm:$0xf]
      %v1355 = vld [vmem:[%s3 + $0x120] sm:$0xf]
      %v1356 = vld [vmem:[%s3 + $0x124] sm:$0xf]
      %v1357 = vld [vmem:[%s3 + $0x128] sm:$0xf]
      %v1358 = vld [vmem:[%s3 + $0x12c] sm:$0xf]
      %v1359 = vld [vmem:[%s3 + $0x130] sm:$0xf]
      %v1360 = vld [vmem:[%s3 + $0x134] sm:$0xf]
      %v1361 = vld [vmem:[%s3 + $0x138] sm:$0xf]
      %v1362 = vld [vmem:[%s3 + $0x13c] sm:$0xf]
      %v1363 = vld [vmem:[%s3 + $0x140] sm:$0xf]
      %v1364 = vld [vmem:[%s3 + $0x144] sm:$0xf]
      %v1365 = vld [vmem:[%s3 + $0x148] sm:$0xf]
      %v1366 = vld [vmem:[%s3 + $0x14c] sm:$0xf]
      %v1367 = vld [vmem:[%s3 + $0x150] sm:$0xf]
      %v1368 = vld [vmem:[%s3 + $0x154] sm:$0xf]
      %v1369 = vld [vmem:[%s3 + $0x158] sm:$0xf]
      %v1370 = vld [vmem:[%s3 + $0x15c] sm:$0xf]
      %v1371 = vld [vmem:[%s3 + $0x160] sm:$0xf]
      %v1372 = vld [vmem:[%s3 + $0x164] sm:$0xf]
      %v1373 = vld [vmem:[%s3 + $0x168] sm:$0xf]
      %v1374 = vld [vmem:[%s3 + $0x16c] sm:$0xf]
      %v1375 = vld [vmem:[%s3 + $0x170] sm:$0xf]
      %v1376 = vld [vmem:[%s3 + $0x174] sm:$0xf]
      %v1377 = vld [vmem:[%s3 + $0x178] sm:$0xf]
      %v1378 = vld [vmem:[%s3 + $0x17c] sm:$0xf]
      %v1475 = vunpack.c.l.b16 %v1283
      %v1476 = vunpack.c.l.b16 %v1284
      %v1477 = vunpack.c.l.b16 %v1285
      %v1478 = vunpack.c.l.b16 %v1286
      %v1479 = vunpack.c.l.b16 %v1287
      %v1480 = vunpack.c.l.b16 %v1288
      %v1481 = vunpack.c.l.b16 %v1289
      %v1482 = vunpack.c.l.b16 %v1290
      %v1483 = vunpack.c.l.b16 %v1291
      %v1484 = vunpack.c.l.b16 %v1292
      %v1485 = vunpack.c.l.b16 %v1293
      %v1486 = vunpack.c.l.b16 %v1294
      %v1487 = vunpack.c.l.b16 %v1295
      %v1488 = vunpack.c.l.b16 %v1296
      %v1489 = vunpack.c.l.b16 %v1297
      %v1490 = vunpack.c.l.b16 %v1298
      %v1491 = vunpack.c.l.b16 %v1299
      %v1492 = vunpack.c.l.b16 %v1300
      %v1493 = vunpack.c.l.b16 %v1301
      %v1494 = vunpack.c.l.b16 %v1302
      %v1495 = vunpack.c.l.b16 %v1303
      %v1496 = vunpack.c.l.b16 %v1304
      %v1497 = vunpack.c.l.b16 %v1305
      %v1498 = vunpack.c.l.b16 %v1306
      %v1499 = vunpack.c.l.b16 %v1307
      %v1500 = vunpack.c.l.b16 %v1308
      %v1501 = vunpack.c.l.b16 %v1309
      %v1502 = vunpack.c.l.b16 %v1310
      %v1503 = vunpack.c.l.b16 %v1311
      %v1504 = vunpack.c.l.b16 %v1312
      %v1505 = vunpack.c.l.b16 %v1313
      %v1506 = vunpack.c.l.b16 %v1314
      %v1507 = vunpack.c.l.b16 %v1315
      %v1508 = vunpack.c.l.b16 %v1316
      %v1509 = vunpack.c.l.b16 %v1317
      %v1510 = vunpack.c.l.b16 %v1318
      %v1511 = vunpack.c.l.b16 %v1319
      %v1512 = vunpack.c.l.b16 %v1320
      %v1513 = vunpack.c.l.b16 %v1321
      %v1514 = vunpack.c.l.b16 %v1322
      %v1515 = vunpack.c.l.b16 %v1323
      %v1516 = vunpack.c.l.b16 %v1324
      %v1517 = vunpack.c.l.b16 %v1325
      %v1518 = vunpack.c.l.b16 %v1326
      %v1519 = vunpack.c.l.b16 %v1327
      %v1520 = vunpack.c.l.b16 %v1328
      %v1521 = vunpack.c.l.b16 %v1329
      %v1522 = vunpack.c.l.b16 %v1330
      %v1523 = vunpack.c.l.b16 %v1331
      %v1524 = vunpack.c.l.b16 %v1332
      %v1525 = vunpack.c.l.b16 %v1333
      %v1526 = vunpack.c.l.b16 %v1334
      %v1527 = vunpack.c.l.b16 %v1335
      %v1528 = vunpack.c.l.b16 %v1336
      %v1529 = vunpack.c.l.b16 %v1337
      %v1530 = vunpack.c.l.b16 %v1338
      %v1531 = vunpack.c.l.b16 %v1339
      %v1532 = vunpack.c.l.b16 %v1340
      %v1533 = vunpack.c.l.b16 %v1341
      %v1534 = vunpack.c.l.b16 %v1342
      %v1535 = vunpack.c.l.b16 %v1343
      %v1536 = vunpack.c.l.b16 %v1344
      %v1537 = vunpack.c.l.b16 %v1345
      %v1538 = vunpack.c.l.b16 %v1346
      %v1539 = vunpack.c.l.b16 %v1347
      %v1540 = vunpack.c.l.b16 %v1348
      %v1541 = vunpack.c.l.b16 %v1349
      %v1542 = vunpack.c.l.b16 %v1350
      %v1543 = vunpack.c.l.b16 %v1351
      %v1544 = vunpack.c.l.b16 %v1352
      %v1545 = vunpack.c.l.b16 %v1353
      %v1546 = vunpack.c.l.b16 %v1354
      %v1547 = vunpack.c.l.b16 %v1355
      %v1548 = vunpack.c.l.b16 %v1356
      %v1549 = vunpack.c.l.b16 %v1357
      %v1550 = vunpack.c.l.b16 %v1358
      %v1551 = vunpack.c.l.b16 %v1359
      %v1552 = vunpack.c.l.b16 %v1360
      %v1553 = vunpack.c.l.b16 %v1361
      %v1554 = vunpack.c.l.b16 %v1362
      %v1555 = vunpack.c.l.b16 %v1363
      %v1556 = vunpack.c.l.b16 %v1364
      %v1557 = vunpack.c.l.b16 %v1365
      %v1558 = vunpack.c.l.b16 %v1366
      %v1559 = vunpack.c.l.b16 %v1367
      %v1560 = vunpack.c.l.b16 %v1368
      %v1561 = vunpack.c.l.b16 %v1369
      %v1562 = vunpack.c.l.b16 %v1370
      %v1563 = vunpack.c.l.b16 %v1371
      %v1564 = vunpack.c.l.b16 %v1372
      %v1565 = vunpack.c.l.b16 %v1373
      %v1566 = vunpack.c.l.b16 %v1374
      %v1567 = vunpack.c.l.b16 %v1375
      %v1568 = vunpack.c.l.b16 %v1376
      %v1569 = vunpack.c.l.b16 %v1377
      %v1570 = vunpack.c.l.b16 %v1378
      %v1571 = vpack.c.b16 %v1476, %v1475
      %v1572 = vpack.c.b16 %v1478, %v1477
      %v1573 = vpack.c.b16 %v1480, %v1479
      %v1574 = vpack.c.b16 %v1482, %v1481
      %v1575 = vpack.c.b16 %v1484, %v1483
      %v1576 = vpack.c.b16 %v1486, %v1485
      %v1577 = vpack.c.b16 %v1488, %v1487
      %v1578 = vpack.c.b16 %v1490, %v1489
      %v1579 = vpack.c.b16 %v1492, %v1491
      %v1580 = vpack.c.b16 %v1494, %v1493
      %v1581 = vpack.c.b16 %v1496, %v1495
      %v1582 = vpack.c.b16 %v1498, %v1497
      %v1583 = vpack.c.b16 %v1500, %v1499
      %v1584 = vpack.c.b16 %v1502, %v1501
      %v1585 = vpack.c.b16 %v1504, %v1503
      %v1586 = vpack.c.b16 %v1506, %v1505
      %v1587 = vpack.c.b16 %v1508, %v1507
      %v1588 = vpack.c.b16 %v1510, %v1509
      %v1589 = vpack.c.b16 %v1512, %v1511
      %v1590 = vpack.c.b16 %v1514, %v1513
      %v1591 = vpack.c.b16 %v1516, %v1515
      %v1592 = vpack.c.b16 %v1518, %v1517
      %v1593 = vpack.c.b16 %v1520, %v1519
      %v1594 = vpack.c.b16 %v1522, %v1521
      %v1595 = vpack.c.b16 %v1524, %v1523
      %v1596 = vpack.c.b16 %v1526, %v1525
      %v1597 = vpack.c.b16 %v1528, %v1527
      %v1598 = vpack.c.b16 %v1530, %v1529
      %v1599 = vpack.c.b16 %v1532, %v1531
      %v1600 = vpack.c.b16 %v1534, %v1533
      %v1601 = vpack.c.b16 %v1536, %v1535
      %v1602 = vpack.c.b16 %v1538, %v1537
      %v1603 = vpack.c.b16 %v1540, %v1539
      %v1604 = vpack.c.b16 %v1542, %v1541
      %v1605 = vpack.c.b16 %v1544, %v1543
      %v1606 = vpack.c.b16 %v1546, %v1545
      %v1607 = vpack.c.b16 %v1548, %v1547
      %v1608 = vpack.c.b16 %v1550, %v1549
      %v1609 = vpack.c.b16 %v1552, %v1551
      %v1610 = vpack.c.b16 %v1554, %v1553
      %v1611 = vpack.c.b16 %v1556, %v1555
      %v1612 = vpack.c.b16 %v1558, %v1557
      %v1613 = vpack.c.b16 %v1560, %v1559
      %v1614 = vpack.c.b16 %v1562, %v1561
      %v1615 = vpack.c.b16 %v1564, %v1563
      %v1616 = vpack.c.b16 %v1566, %v1565
      %v1617 = vpack.c.b16 %v1568, %v1567
      %v1618 = vpack.c.b16 %v1570, %v1569
      %v1620 = vsel %vm893, %v1571, 0
      %v1623 = vsel %vm893, %v1572, 0
      %v1626 = vsel %vm893, %v1573, 0
      %v1629 = vsel %vm893, %v1574, 0
      %v1632 = vsel %vm893, %v1575, 0
      %v1635 = vsel %vm893, %v1576, 0
      %v1638 = vsel %vm893, %v1577, 0
      %v1641 = vsel %vm893, %v1578, 0
      %v1644 = vsel %vm893, %v1579, 0
      %v1647 = vsel %vm893, %v1580, 0
      %v1650 = vsel %vm893, %v1581, 0
      %v1653 = vsel %vm893, %v1582, 0
      %v1656 = vsel %vm893, %v1583, 0
      %v1659 = vsel %vm893, %v1584, 0
      %v1662 = vsel %vm893, %v1585, 0
      %v1665 = vsel %vm893, %v1586, 0
      %v1668 = vsel %vm893, %v1587, 0
      %v1671 = vsel %vm893, %v1588, 0
      %v1674 = vsel %vm893, %v1589, 0
      %v1677 = vsel %vm893, %v1590, 0
      %v1680 = vsel %vm893, %v1591, 0
      %v1683 = vsel %vm893, %v1592, 0
      %v1686 = vsel %vm893, %v1593, 0
      %v1689 = vsel %vm893, %v1594, 0
      %v1692 = vsel %vm893, %v1595, 0
      %v1695 = vsel %vm893, %v1596, 0
      %v1698 = vsel %vm893, %v1597, 0
      %v1701 = vsel %vm893, %v1598, 0
      %v1704 = vsel %vm893, %v1599, 0
      %v1707 = vsel %vm893, %v1600, 0
      %v1710 = vsel %vm893, %v1601, 0
      %v1713 = vsel %vm893, %v1602, 0
      %v1716 = vsel %vm893, %v1603, 0
      %v1719 = vsel %vm893, %v1604, 0
      %v1722 = vsel %vm893, %v1605, 0
      %v1725 = vsel %vm893, %v1606, 0
      %v1728 = vsel %vm893, %v1607, 0
      %v1731 = vsel %vm893, %v1608, 0
      %v1734 = vsel %vm893, %v1609, 0
      %v1737 = vsel %vm893, %v1610, 0
      %v1740 = vsel %vm893, %v1611, 0
      %v1743 = vsel %vm893, %v1612, 0
      %v1746 = vsel %vm893, %v1613, 0
      %v1749 = vsel %vm893, %v1614, 0
      %v1752 = vsel %vm893, %v1615, 0
      %v1755 = vsel %vm893, %v1616, 0
      %v1758 = vsel %vm893, %v1617, 0
      %v1761 = vsel %vm893, %v1618, 0
      %1763 = vmatprep.subr.bf16.mxu0 0
      %1764 = vmatpush1.bf16.msra.mxu0 0
      %1765 = vmatprep.subr.bf16.mxu0 0
      %1766 = vmatpush1.bf16.msra.mxu0 %v992
      %1767 = vmatprep.subr.bf16.mxu0 0
      %1768 = vmatpush1.bf16.msra.mxu0 %v885
      %1769 = vmatprep.subr.bf16.mxu0 0
      %1770 = vmatpush1.bf16.msra.mxu0 %v884
      %1771 = vmatprep.subr.bf16.mxu0 0
      %1772 = vmatpush1.bf16.msra.mxu0 %v883
      %1773 = vmatprep.subr.bf16.mxu0 0
      %1774 = vmatpush1.bf16.msra.mxu0 %v882
      %1775 = vmatprep.subr.bf16.mxu0 0
      %1776 = vmatpush1.bf16.msra.mxu0 %v881
      %1777 = vmatprep.subr.bf16.mxu0 0
      %1778 = vmatpush1.bf16.msra.mxu0 %v880
      %1779 = vmatprep.subr.bf16.mxu0 0
      %1780 = vmatpush2.bf16.msra.mxu0 0
      %1781 = vmatprep.subr.bf16.mxu0 0
      %1782 = vmatpush2.bf16.msra.mxu0 0
      %1783 = vmatprep.subr.bf16.mxu0 0
      %1784 = vmatpush2.bf16.msra.mxu0 0
      %1785 = vmatprep.subr.bf16.mxu0 0
      %1786 = vmatpush2.bf16.msra.mxu0 0
      %1787 = vmatprep.subr.bf16.mxu0 0
      %1788 = vmatpush2.bf16.msra.mxu0 0
      %1789 = vmatprep.subr.bf16.mxu0 0
      %1790 = vmatpush2.bf16.msra.mxu0 0
      %1791 = vmatprep.subr.bf16.mxu0 0
      %1792 = vmatpush2.bf16.msra.mxu0 0
      %1793 = vmatprep.subr.bf16.mxu0 0
      %1794 = vmatpush2.bf16.msra.mxu0 0
      %1795 = vmatprep.mubr.bf16.mxu0 0
      %1796 = vmatmul.mubr.bf16.gmra.mxu0 %v1620
      %v1797 = vpop.f32.mrf.mxu0
      %v1798 = vadd.f32 0.0, %v1797
      %v1799 = vpop.f32.mrf.mxu0
      %v1800 = vpop.f32.mrf.mxu0
      %v1801 = vadd.f32 0.0, %v1800
      %v1802 = vpop.f32.mrf.mxu0
      %1803 = vmatprep.mubr.bf16.mxu0 0
      %1804 = vmatmul.mubr.bf16.gmra.mxu0 %v1623
      %v1805 = vpop.f32.mrf.mxu0
      %v1806 = vadd.f32 0.0, %v1805
      %v1807 = vpop.f32.mrf.mxu0
      %v1808 = vpop.f32.mrf.mxu0
      %v1809 = vadd.f32 0.0, %v1808
      %v1810 = vpop.f32.mrf.mxu0
      %1811 = vmatprep.mubr.bf16.mxu0 0
      %1812 = vmatmul.mubr.bf16.gmra.mxu0 %v1626
      %v1813 = vpop.f32.mrf.mxu0
      %v1814 = vadd.f32 0.0, %v1813
      %v1815 = vpop.f32.mrf.mxu0
      %v1816 = vpop.f32.mrf.mxu0
      %v1817 = vadd.f32 0.0, %v1816
      %v1818 = vpop.f32.mrf.mxu0
      %1819 = vmatprep.mubr.bf16.mxu0 0
      %1820 = vmatmul.mubr.bf16.gmra.mxu0 %v1629
      %v1821 = vpop.f32.mrf.mxu0
      %v1822 = vadd.f32 0.0, %v1821
      %v1823 = vpop.f32.mrf.mxu0
      %v1824 = vpop.f32.mrf.mxu0
      %v1825 = vadd.f32 0.0, %v1824
      %v1826 = vpop.f32.mrf.mxu0
      %1827 = vmatprep.mubr.bf16.mxu0 0
      %1828 = vmatmul.mubr.bf16.gmra.mxu0 %v1632
      %v1829 = vpop.f32.mrf.mxu0
      %v1830 = vadd.f32 0.0, %v1829
      %v1831 = vpop.f32.mrf.mxu0
      %v1832 = vpop.f32.mrf.mxu0
      %v1833 = vadd.f32 0.0, %v1832
      %v1834 = vpop.f32.mrf.mxu0
      %1835 = vmatprep.mubr.bf16.mxu0 0
      %1836 = vmatmul.mubr.bf16.gmra.mxu0 %v1635
      %v1837 = vpop.f32.mrf.mxu0
      %v1838 = vadd.f32 0.0, %v1837
      %v1839 = vpop.f32.mrf.mxu0
      %v1840 = vpop.f32.mrf.mxu0
      %v1841 = vadd.f32 0.0, %v1840
      %v1842 = vpop.f32.mrf.mxu0
      %1843 = vmatprep.mubr.bf16.mxu0 0
      %1844 = vmatmul.mubr.bf16.gmra.mxu0 %v1638
      %v1845 = vpop.f32.mrf.mxu0
      %v1846 = vadd.f32 0.0, %v1845
      %v1847 = vpop.f32.mrf.mxu0
      %v1848 = vpop.f32.mrf.mxu0
      %v1849 = vadd.f32 0.0, %v1848
      %v1850 = vpop.f32.mrf.mxu0
      %1851 = vmatprep.mubr.bf16.mxu0 0
      %1852 = vmatmul.mubr.bf16.gmra.mxu0 %v1641
      %v1853 = vpop.f32.mrf.mxu0
      %v1854 = vadd.f32 0.0, %v1853
      %v1855 = vpop.f32.mrf.mxu0
      %v1856 = vpop.f32.mrf.mxu0
      %v1857 = vadd.f32 0.0, %v1856
      %v1858 = vpop.f32.mrf.mxu0
      %1859 = vmatprep.mubr.bf16.mxu0 0
      %1860 = vmatmul.mubr.bf16.gmra.mxu0 %v1644
      %v1861 = vpop.f32.mrf.mxu0
      %v1862 = vadd.f32 0.0, %v1861
      %v1863 = vpop.f32.mrf.mxu0
      %v1864 = vpop.f32.mrf.mxu0
      %v1865 = vadd.f32 0.0, %v1864
      %v1866 = vpop.f32.mrf.mxu0
      %1867 = vmatprep.mubr.bf16.mxu0 0
      %1868 = vmatmul.mubr.bf16.gmra.mxu0 %v1647
      %v1869 = vpop.f32.mrf.mxu0
      %v1870 = vadd.f32 0.0, %v1869
      %v1871 = vpop.f32.mrf.mxu0
      %v1872 = vpop.f32.mrf.mxu0
      %v1873 = vadd.f32 0.0, %v1872
      %v1874 = vpop.f32.mrf.mxu0
      %1875 = vmatprep.mubr.bf16.mxu0 0
      %1876 = vmatmul.mubr.bf16.gmra.mxu0 %v1650
      %v1877 = vpop.f32.mrf.mxu0
      %v1878 = vadd.f32 0.0, %v1877
      %v1879 = vpop.f32.mrf.mxu0
      %v1880 = vpop.f32.mrf.mxu0
      %v1881 = vadd.f32 0.0, %v1880
      %v1882 = vpop.f32.mrf.mxu0
      %1883 = vmatprep.mubr.bf16.mxu0 0
      %1884 = vmatmul.mubr.bf16.gmra.mxu0 %v1653
      %v1885 = vpop.f32.mrf.mxu0
      %v1886 = vadd.f32 0.0, %v1885
      %v1887 = vpop.f32.mrf.mxu0
      %v1888 = vpop.f32.mrf.mxu0
      %v1889 = vadd.f32 0.0, %v1888
      %v1890 = vpop.f32.mrf.mxu0
      %1891 = vmatprep.mubr.bf16.mxu0 0
      %1892 = vmatmul.mubr.bf16.gmra.mxu0 %v1656
      %v1893 = vpop.f32.mrf.mxu0
      %v1894 = vadd.f32 0.0, %v1893
      %v1895 = vpop.f32.mrf.mxu0
      %v1896 = vpop.f32.mrf.mxu0
      %v1897 = vadd.f32 0.0, %v1896
      %v1898 = vpop.f32.mrf.mxu0
      %1899 = vmatprep.mubr.bf16.mxu0 0
      %1900 = vmatmul.mubr.bf16.gmra.mxu0 %v1659
      %v1901 = vpop.f32.mrf.mxu0
      %v1902 = vadd.f32 0.0, %v1901
      %v1903 = vpop.f32.mrf.mxu0
      %v1904 = vpop.f32.mrf.mxu0
      %v1905 = vadd.f32 0.0, %v1904
      %v1906 = vpop.f32.mrf.mxu0
      %1907 = vmatprep.mubr.bf16.mxu0 0
      %1908 = vmatmul.mubr.bf16.gmra.mxu0 %v1662
      %v1909 = vpop.f32.mrf.mxu0
      %v1910 = vadd.f32 0.0, %v1909
      %v1911 = vpop.f32.mrf.mxu0
      %v1912 = vpop.f32.mrf.mxu0
      %v1913 = vadd.f32 0.0, %v1912
      %v1914 = vpop.f32.mrf.mxu0
      %1915 = vmatprep.mubr.bf16.mxu0 0
      %1916 = vmatmul.mubr.bf16.gmra.mxu0 %v1665
      %v1917 = vpop.f32.mrf.mxu0
      %v1918 = vadd.f32 0.0, %v1917
      %v1919 = vpop.f32.mrf.mxu0
      %v1920 = vpop.f32.mrf.mxu0
      %v1921 = vadd.f32 0.0, %v1920
      %v1922 = vpop.f32.mrf.mxu0
      %1923 = vmatprep.mubr.bf16.mxu0 0
      %1924 = vmatmul.mubr.bf16.gmra.mxu0 %v1668
      %v1925 = vpop.f32.mrf.mxu0
      %v1926 = vadd.f32 0.0, %v1925
      %v1927 = vpop.f32.mrf.mxu0
      %v1928 = vpop.f32.mrf.mxu0
      %v1929 = vadd.f32 0.0, %v1928
      %v1930 = vpop.f32.mrf.mxu0
      %1931 = vmatprep.mubr.bf16.mxu0 0
      %1932 = vmatmul.mubr.bf16.gmra.mxu0 %v1671
      %v1933 = vpop.f32.mrf.mxu0
      %v1934 = vadd.f32 0.0, %v1933
      %v1935 = vpop.f32.mrf.mxu0
      %v1936 = vpop.f32.mrf.mxu0
      %v1937 = vadd.f32 0.0, %v1936
      %v1938 = vpop.f32.mrf.mxu0
      %1939 = vmatprep.mubr.bf16.mxu0 0
      %1940 = vmatmul.mubr.bf16.gmra.mxu0 %v1674
      %v1941 = vpop.f32.mrf.mxu0
      %v1942 = vadd.f32 0.0, %v1941
      %v1943 = vpop.f32.mrf.mxu0
      %v1944 = vpop.f32.mrf.mxu0
      %v1945 = vadd.f32 0.0, %v1944
      %v1946 = vpop.f32.mrf.mxu0
      %1947 = vmatprep.mubr.bf16.mxu0 0
      %1948 = vmatmul.mubr.bf16.gmra.mxu0 %v1677
      %v1949 = vpop.f32.mrf.mxu0
      %v1950 = vadd.f32 0.0, %v1949
      %v1951 = vpop.f32.mrf.mxu0
      %v1952 = vpop.f32.mrf.mxu0
      %v1953 = vadd.f32 0.0, %v1952
      %v1954 = vpop.f32.mrf.mxu0
      %1955 = vmatprep.mubr.bf16.mxu0 0
      %1956 = vmatmul.mubr.bf16.gmra.mxu0 %v1680
      %v1957 = vpop.f32.mrf.mxu0
      %v1958 = vadd.f32 0.0, %v1957
      %v1959 = vpop.f32.mrf.mxu0
      %v1960 = vpop.f32.mrf.mxu0
      %v1961 = vadd.f32 0.0, %v1960
      %v1962 = vpop.f32.mrf.mxu0
      %1963 = vmatprep.mubr.bf16.mxu0 0
      %1964 = vmatmul.mubr.bf16.gmra.mxu0 %v1683
      %v1965 = vpop.f32.mrf.mxu0
      %v1966 = vadd.f32 0.0, %v1965
      %v1967 = vpop.f32.mrf.mxu0
      %v1968 = vpop.f32.mrf.mxu0
      %v1969 = vadd.f32 0.0, %v1968
      %v1970 = vpop.f32.mrf.mxu0
      %1971 = vmatprep.mubr.bf16.mxu0 0
      %1972 = vmatmul.mubr.bf16.gmra.mxu0 %v1686
      %v1973 = vpop.f32.mrf.mxu0
      %v1974 = vadd.f32 0.0, %v1973
      %v1975 = vpop.f32.mrf.mxu0
      %v1976 = vpop.f32.mrf.mxu0
      %v1977 = vadd.f32 0.0, %v1976
      %v1978 = vpop.f32.mrf.mxu0
      %1979 = vmatprep.mubr.bf16.mxu0 0
      %1980 = vmatmul.mubr.bf16.gmra.mxu0 %v1689
      %v1981 = vpop.f32.mrf.mxu0
      %v1982 = vadd.f32 0.0, %v1981
      %v1983 = vpop.f32.mrf.mxu0
      %v1984 = vpop.f32.mrf.mxu0
      %v1985 = vadd.f32 0.0, %v1984
      %v1986 = vpop.f32.mrf.mxu0
      %1987 = vmatprep.mubr.bf16.mxu0 0
      %1988 = vmatmul.mubr.bf16.gmra.mxu0 %v1692
      %v1989 = vpop.f32.mrf.mxu0
      %v1990 = vadd.f32 0.0, %v1989
      %v1991 = vpop.f32.mrf.mxu0
      %v1992 = vpop.f32.mrf.mxu0
      %v1993 = vadd.f32 0.0, %v1992
      %v1994 = vpop.f32.mrf.mxu0
      %1995 = vmatprep.mubr.bf16.mxu0 0
      %1996 = vmatmul.mubr.bf16.gmra.mxu0 %v1695
      %v1997 = vpop.f32.mrf.mxu0
      %v1998 = vadd.f32 0.0, %v1997
      %v1999 = vpop.f32.mrf.mxu0
      %v2000 = vpop.f32.mrf.mxu0
      %v2001 = vadd.f32 0.0, %v2000
      %v2002 = vpop.f32.mrf.mxu0
      %2003 = vmatprep.mubr.bf16.mxu0 0
      %2004 = vmatmul.mubr.bf16.gmra.mxu0 %v1698
      %v2005 = vpop.f32.mrf.mxu0
      %v2006 = vadd.f32 0.0, %v2005
      %v2007 = vpop.f32.mrf.mxu0
      %v2008 = vpop.f32.mrf.mxu0
      %v2009 = vadd.f32 0.0, %v2008
      %v2010 = vpop.f32.mrf.mxu0
      %2011 = vmatprep.mubr.bf16.mxu0 0
      %2012 = vmatmul.mubr.bf16.gmra.mxu0 %v1701
      %v2013 = vpop.f32.mrf.mxu0
      %v2014 = vadd.f32 0.0, %v2013
      %v2015 = vpop.f32.mrf.mxu0
      %v2016 = vpop.f32.mrf.mxu0
      %v2017 = vadd.f32 0.0, %v2016
      %v2018 = vpop.f32.mrf.mxu0
      %2019 = vmatprep.mubr.bf16.mxu0 0
      %2020 = vmatmul.mubr.bf16.gmra.mxu0 %v1704
      %v2021 = vpop.f32.mrf.mxu0
      %v2022 = vadd.f32 0.0, %v2021
      %v2023 = vpop.f32.mrf.mxu0
      %v2024 = vpop.f32.mrf.mxu0
      %v2025 = vadd.f32 0.0, %v2024
      %v2026 = vpop.f32.mrf.mxu0
      %2027 = vmatprep.mubr.bf16.mxu0 0
      %2028 = vmatmul.mubr.bf16.gmra.mxu0 %v1707
      %v2029 = vpop.f32.mrf.mxu0
      %v2030 = vadd.f32 0.0, %v2029
      %v2031 = vpop.f32.mrf.mxu0
      %v2032 = vpop.f32.mrf.mxu0
      %v2033 = vadd.f32 0.0, %v2032
      %v2034 = vpop.f32.mrf.mxu0
      %2035 = vmatprep.mubr.bf16.mxu0 0
      %2036 = vmatmul.mubr.bf16.gmra.mxu0 %v1710
      %v2037 = vpop.f32.mrf.mxu0
      %v2038 = vadd.f32 0.0, %v2037
      %v2039 = vpop.f32.mrf.mxu0
      %v2040 = vpop.f32.mrf.mxu0
      %v2041 = vadd.f32 0.0, %v2040
      %v2042 = vpop.f32.mrf.mxu0
      %2043 = vmatprep.mubr.bf16.mxu0 0
      %2044 = vmatmul.mubr.bf16.gmra.mxu0 %v1713
      %v2045 = vpop.f32.mrf.mxu0
      %v2046 = vadd.f32 0.0, %v2045
      %v2047 = vpop.f32.mrf.mxu0
      %v2048 = vpop.f32.mrf.mxu0
      %v2049 = vadd.f32 0.0, %v2048
      %v2050 = vpop.f32.mrf.mxu0
      %2051 = vmatprep.mubr.bf16.mxu0 0
      %2052 = vmatmul.mubr.bf16.gmra.mxu0 %v1716
      %v2053 = vpop.f32.mrf.mxu0
      %v2054 = vadd.f32 0.0, %v2053
      %v2055 = vpop.f32.mrf.mxu0
      %v2056 = vpop.f32.mrf.mxu0
      %v2057 = vadd.f32 0.0, %v2056
      %v2058 = vpop.f32.mrf.mxu0
      %2059 = vmatprep.mubr.bf16.mxu0 0
      %2060 = vmatmul.mubr.bf16.gmra.mxu0 %v1719
      %v2061 = vpop.f32.mrf.mxu0
      %v2062 = vadd.f32 0.0, %v2061
      %v2063 = vpop.f32.mrf.mxu0
      %v2064 = vpop.f32.mrf.mxu0
      %v2065 = vadd.f32 0.0, %v2064
      %v2066 = vpop.f32.mrf.mxu0
      %2067 = vmatprep.mubr.bf16.mxu0 0
      %2068 = vmatmul.mubr.bf16.gmra.mxu0 %v1722
      %v2069 = vpop.f32.mrf.mxu0
      %v2070 = vadd.f32 0.0, %v2069
      %v2071 = vpop.f32.mrf.mxu0
      %v2072 = vpop.f32.mrf.mxu0
      %v2073 = vadd.f32 0.0, %v2072
      %v2074 = vpop.f32.mrf.mxu0
      %2075 = vmatprep.mubr.bf16.mxu0 0
      %2076 = vmatmul.mubr.bf16.gmra.mxu0 %v1725
      %v2077 = vpop.f32.mrf.mxu0
      %v2078 = vadd.f32 0.0, %v2077
      %v2079 = vpop.f32.mrf.mxu0
      %v2080 = vpop.f32.mrf.mxu0
      %v2081 = vadd.f32 0.0, %v2080
      %v2082 = vpop.f32.mrf.mxu0
      %2083 = vmatprep.mubr.bf16.mxu0 0
      %2084 = vmatmul.mubr.bf16.gmra.mxu0 %v1728
      %v2085 = vpop.f32.mrf.mxu0
      %v2086 = vadd.f32 0.0, %v2085
      %v2087 = vpop.f32.mrf.mxu0
      %v2088 = vpop.f32.mrf.mxu0
      %v2089 = vadd.f32 0.0, %v2088
      %v2090 = vpop.f32.mrf.mxu0
      %2091 = vmatprep.mubr.bf16.mxu0 0
      %2092 = vmatmul.mubr.bf16.gmra.mxu0 %v1731
      %v2093 = vpop.f32.mrf.mxu0
      %v2094 = vadd.f32 0.0, %v2093
      %v2095 = vpop.f32.mrf.mxu0
      %v2096 = vpop.f32.mrf.mxu0
      %v2097 = vadd.f32 0.0, %v2096
      %v2098 = vpop.f32.mrf.mxu0
      %2099 = vmatprep.mubr.bf16.mxu0 0
      %2100 = vmatmul.mubr.bf16.gmra.mxu0 %v1734
      %v2101 = vpop.f32.mrf.mxu0
      %v2102 = vadd.f32 0.0, %v2101
      %v2103 = vpop.f32.mrf.mxu0
      %v2104 = vpop.f32.mrf.mxu0
      %v2105 = vadd.f32 0.0, %v2104
      %v2106 = vpop.f32.mrf.mxu0
      %2107 = vmatprep.mubr.bf16.mxu0 0
      %2108 = vmatmul.mubr.bf16.gmra.mxu0 %v1737
      %v2109 = vpop.f32.mrf.mxu0
      %v2110 = vadd.f32 0.0, %v2109
      %v2111 = vpop.f32.mrf.mxu0
      %v2112 = vpop.f32.mrf.mxu0
      %v2113 = vadd.f32 0.0, %v2112
      %v2114 = vpop.f32.mrf.mxu0
      %2115 = vmatprep.mubr.bf16.mxu0 0
      %2116 = vmatmul.mubr.bf16.gmra.mxu0 %v1740
      %v2117 = vpop.f32.mrf.mxu0
      %v2118 = vadd.f32 0.0, %v2117
      %v2119 = vpop.f32.mrf.mxu0
      %v2120 = vpop.f32.mrf.mxu0
      %v2121 = vadd.f32 0.0, %v2120
      %v2122 = vpop.f32.mrf.mxu0
      %2123 = vmatprep.mubr.bf16.mxu0 0
      %2124 = vmatmul.mubr.bf16.gmra.mxu0 %v1743
      %v2125 = vpop.f32.mrf.mxu0
      %v2126 = vadd.f32 0.0, %v2125
      %v2127 = vpop.f32.mrf.mxu0
      %v2128 = vpop.f32.mrf.mxu0
      %v2129 = vadd.f32 0.0, %v2128
      %v2130 = vpop.f32.mrf.mxu0
      %2131 = vmatprep.mubr.bf16.mxu0 0
      %2132 = vmatmul.mubr.bf16.gmra.mxu0 %v1746
      %v2133 = vpop.f32.mrf.mxu0
      %v2134 = vadd.f32 0.0, %v2133
      %v2135 = vpop.f32.mrf.mxu0
      %v2136 = vpop.f32.mrf.mxu0
      %v2137 = vadd.f32 0.0, %v2136
      %v2138 = vpop.f32.mrf.mxu0
      %2139 = vmatprep.mubr.bf16.mxu0 0
      %2140 = vmatmul.mubr.bf16.gmra.mxu0 %v1749
      %v2141 = vpop.f32.mrf.mxu0
      %v2142 = vadd.f32 0.0, %v2141
      %v2143 = vpop.f32.mrf.mxu0
      %v2144 = vpop.f32.mrf.mxu0
      %v2145 = vadd.f32 0.0, %v2144
      %v2146 = vpop.f32.mrf.mxu0
      %2147 = vmatprep.mubr.bf16.mxu0 0
      %2148 = vmatmul.mubr.bf16.gmra.mxu0 %v1752
      %v2149 = vpop.f32.mrf.mxu0
      %v2150 = vadd.f32 0.0, %v2149
      %v2151 = vpop.f32.mrf.mxu0
      %v2152 = vpop.f32.mrf.mxu0
      %v2153 = vadd.f32 0.0, %v2152
      %v2154 = vpop.f32.mrf.mxu0
      %2155 = vmatprep.mubr.bf16.mxu0 0
      %2156 = vmatmul.mubr.bf16.gmra.mxu0 %v1755
      %v2157 = vpop.f32.mrf.mxu0
      %v2158 = vadd.f32 0.0, %v2157
      %v2159 = vpop.f32.mrf.mxu0
      %v2160 = vpop.f32.mrf.mxu0
      %v2161 = vadd.f32 0.0, %v2160
      %v2162 = vpop.f32.mrf.mxu0
      %2163 = vmatprep.mubr.bf16.mxu0 0
      %2164 = vmatmul.mubr.bf16.gmra.mxu0 %v1758
      %v2165 = vpop.f32.mrf.mxu0
      %v2166 = vadd.f32 0.0, %v2165
      %v2167 = vpop.f32.mrf.mxu0
      %v2168 = vpop.f32.mrf.mxu0
      %v2169 = vadd.f32 0.0, %v2168
      %v2170 = vpop.f32.mrf.mxu0
      %2171 = vmatprep.mubr.bf16.mxu0 0
      %2172 = vmatmul.mubr.bf16.gmra.mxu0 %v1761
      %v2173 = vpop.f32.mrf.mxu0
      %v2174 = vadd.f32 0.0, %v2173
      %v2175 = vpop.f32.mrf.mxu0
      %v2176 = vpop.f32.mrf.mxu0
      %v2177 = vadd.f32 0.0, %v2176
      %v2178 = vpop.f32.mrf.mxu0
      %2179 = vdwg.mxu0
      %v2180 = vmul.f32 %v1798, %v1798
      %v2181 = vmul.f32 %v1801, %v1801
      %v2182 = vmul.f32 %v1806, %v1806
      %v2183 = vmul.f32 %v1809, %v1809
      %v2184 = vmul.f32 %v1814, %v1814
      %v2185 = vmul.f32 %v1817, %v1817
      %v2186 = vmul.f32 %v1822, %v1822
      %v2187 = vmul.f32 %v1825, %v1825
      %v2188 = vmul.f32 %v1830, %v1830
      %v2189 = vmul.f32 %v1833, %v1833
      %v2190 = vmul.f32 %v1838, %v1838
      %v2191 = vmul.f32 %v1841, %v1841
      %v2192 = vmul.f32 %v1846, %v1846
      %v2193 = vmul.f32 %v1849, %v1849
      %v2194 = vmul.f32 %v1854, %v1854
      %v2195 = vmul.f32 %v1857, %v1857
      %v2196 = vmul.f32 %v1862, %v1862
      %v2197 = vmul.f32 %v1865, %v1865
      %v2198 = vmul.f32 %v1870, %v1870
      %v2199 = vmul.f32 %v1873, %v1873
      %v2200 = vmul.f32 %v1878, %v1878
      %v2201 = vmul.f32 %v1881, %v1881
      %v2202 = vmul.f32 %v1886, %v1886
      %v2203 = vmul.f32 %v1889, %v1889
      %v2204 = vmul.f32 %v1894, %v1894
      %v2205 = vmul.f32 %v1897, %v1897
      %v2206 = vmul.f32 %v1902, %v1902
      %v2207 = vmul.f32 %v1905, %v1905
      %v2208 = vmul.f32 %v1910, %v1910
      %v2209 = vmul.f32 %v1913, %v1913
      %v2210 = vmul.f32 %v1918, %v1918
      %v2211 = vmul.f32 %v1921, %v1921
      %v2212 = vmul.f32 %v1926, %v1926
      %v2213 = vmul.f32 %v1929, %v1929
      %v2214 = vmul.f32 %v1934, %v1934
      %v2215 = vmul.f32 %v1937, %v1937
      %v2216 = vmul.f32 %v1942, %v1942
      %v2217 = vmul.f32 %v1945, %v1945
      %v2218 = vmul.f32 %v1950, %v1950
      %v2219 = vmul.f32 %v1953, %v1953
      %v2220 = vmul.f32 %v1958, %v1958
      %v2221 = vmul.f32 %v1961, %v1961
      %v2222 = vmul.f32 %v1966, %v1966
      %v2223 = vmul.f32 %v1969, %v1969
      %v2224 = vmul.f32 %v1974, %v1974
      %v2225 = vmul.f32 %v1977, %v1977
      %v2226 = vmul.f32 %v1982, %v1982
      %v2227 = vmul.f32 %v1985, %v1985
      %v2228 = vmul.f32 %v1990, %v1990
      %v2229 = vmul.f32 %v1993, %v1993
      %v2230 = vmul.f32 %v1998, %v1998
      %v2231 = vmul.f32 %v2001, %v2001
      %v2232 = vmul.f32 %v2006, %v2006
      %v2233 = vmul.f32 %v2009, %v2009
      %v2234 = vmul.f32 %v2014, %v2014
      %v2235 = vmul.f32 %v2017, %v2017
      %v2236 = vmul.f32 %v2022, %v2022
      %v2237 = vmul.f32 %v2025, %v2025
      %v2238 = vmul.f32 %v2030, %v2030
      %v2239 = vmul.f32 %v2033, %v2033
      %v2240 = vmul.f32 %v2038, %v2038
      %v2241 = vmul.f32 %v2041, %v2041
      %v2242 = vmul.f32 %v2046, %v2046
      %v2243 = vmul.f32 %v2049, %v2049
      %v2244 = vmul.f32 %v2054, %v2054
      %v2245 = vmul.f32 %v2057, %v2057
      %v2246 = vmul.f32 %v2062, %v2062
      %v2247 = vmul.f32 %v2065, %v2065
      %v2248 = vmul.f32 %v2070, %v2070
      %v2249 = vmul.f32 %v2073, %v2073
      %v2250 = vmul.f32 %v2078, %v2078
      %v2251 = vmul.f32 %v2081, %v2081
      %v2252 = vmul.f32 %v2086, %v2086
      %v2253 = vmul.f32 %v2089, %v2089
      %v2254 = vmul.f32 %v2094, %v2094
      %v2255 = vmul.f32 %v2097, %v2097
      %v2256 = vmul.f32 %v2102, %v2102
      %v2257 = vmul.f32 %v2105, %v2105
      %v2258 = vmul.f32 %v2110, %v2110
      %v2259 = vmul.f32 %v2113, %v2113
      %v2260 = vmul.f32 %v2118, %v2118
      %v2261 = vmul.f32 %v2121, %v2121
      %v2262 = vmul.f32 %v2126, %v2126
      %v2263 = vmul.f32 %v2129, %v2129
      %v2264 = vmul.f32 %v2134, %v2134
      %v2265 = vmul.f32 %v2137, %v2137
      %v2266 = vmul.f32 %v2142, %v2142
      %v2267 = vmul.f32 %v2145, %v2145
      %v2268 = vmul.f32 %v2150, %v2150
      %v2269 = vmul.f32 %v2153, %v2153
      %v2270 = vmul.f32 %v2158, %v2158
      %v2271 = vmul.f32 %v2161, %v2161
      %v2272 = vmul.f32 %v2166, %v2166
      %v2273 = vmul.f32 %v2169, %v2169
      %v2274 = vmul.f32 %v2174, %v2174
      %v2275 = vmul.f32 %v2177, %v2177
      %v2276 = vadd.f32 %v2180, %v2228
      %v2277 = vadd.f32 %v2181, %v2229
      %v2278 = vadd.f32 %v2182, %v2230
      %v2279 = vadd.f32 %v2183, %v2231
      %v2280 = vadd.f32 %v2184, %v2232
      %v2281 = vadd.f32 %v2185, %v2233
      %v2282 = vadd.f32 %v2186, %v2234
      %v2283 = vadd.f32 %v2187, %v2235
      %v2284 = vadd.f32 %v2188, %v2236
      %v2285 = vadd.f32 %v2189, %v2237
      %v2286 = vadd.f32 %v2190, %v2238
      %v2287 = vadd.f32 %v2191, %v2239
      %v2288 = vadd.f32 %v2192, %v2240
      %v2289 = vadd.f32 %v2193, %v2241
      %v2290 = vadd.f32 %v2194, %v2242
      %v2291 = vadd.f32 %v2195, %v2243
      %v2292 = vadd.f32 %v2196, %v2244
      %v2293 = vadd.f32 %v2197, %v2245
      %v2294 = vadd.f32 %v2198, %v2246
      %v2295 = vadd.f32 %v2199, %v2247
      %v2296 = vadd.f32 %v2200, %v2248
      %v2297 = vadd.f32 %v2201, %v2249
      %v2298 = vadd.f32 %v2202, %v2250
      %v2299 = vadd.f32 %v2203, %v2251
      %v2300 = vadd.f32 %v2204, %v2252
      %v2301 = vadd.f32 %v2205, %v2253
      %v2302 = vadd.f32 %v2206, %v2254
      %v2303 = vadd.f32 %v2207, %v2255
      %v2304 = vadd.f32 %v2208, %v2256
      %v2305 = vadd.f32 %v2209, %v2257
      %v2306 = vadd.f32 %v2210, %v2258
      %v2307 = vadd.f32 %v2211, %v2259
      %v2308 = vadd.f32 %v2212, %v2260
      %v2309 = vadd.f32 %v2213, %v2261
      %v2310 = vadd.f32 %v2214, %v2262
      %v2311 = vadd.f32 %v2215, %v2263
      %v2312 = vadd.f32 %v2216, %v2264
      %v2313 = vadd.f32 %v2217, %v2265
      %v2314 = vadd.f32 %v2218, %v2266
      %v2315 = vadd.f32 %v2219, %v2267
      %v2316 = vadd.f32 %v2220, %v2268
      %v2317 = vadd.f32 %v2221, %v2269
      %v2318 = vadd.f32 %v2222, %v2270
      %v2319 = vadd.f32 %v2223, %v2271
      %v2320 = vadd.f32 %v2224, %v2272
      %v2321 = vadd.f32 %v2225, %v2273
      %v2322 = vadd.f32 %v2226, %v2274
      %v2323 = vadd.f32 %v2227, %v2275
      %v2324 = vrsqrt.pop %v2276
      %v2325 = vmul.f32 %v2276, %v2324
      %vm2326 = vcmp.eq.f32.partialorder %v2276, inf
      %v2327 = vsel %vm2326, %v2276, %v2325
      %vm2328 = vcmp.eq.f32.partialorder %v2276, 0.0
      %v2329 = vand.u32 %v2276, 2147483648
      %v2330 = vsel %vm2328, %v2329, %v2327
      %v2331 = vrsqrt.pop %v2277
      %v2332 = vmul.f32 %v2277, %v2331
      %vm2333 = vcmp.eq.f32.partialorder %v2277, inf
      %v2334 = vsel %vm2333, %v2277, %v2332
      %vm2335 = vcmp.eq.f32.partialorder %v2277, 0.0
      %v2336 = vand.u32 %v2277, 2147483648
      %v2337 = vsel %vm2335, %v2336, %v2334
      %v2338 = vrsqrt.pop %v2278
      %v2339 = vmul.f32 %v2278, %v2338
      %vm2340 = vcmp.eq.f32.partialorder %v2278, inf
      %v2341 = vsel %vm2340, %v2278, %v2339
      %vm2342 = vcmp.eq.f32.partialorder %v2278, 0.0
      %v2343 = vand.u32 %v2278, 2147483648
      %v2344 = vsel %vm2342, %v2343, %v2341
      %v2345 = vrsqrt.pop %v2279
      %v2346 = vmul.f32 %v2279, %v2345
      %vm2347 = vcmp.eq.f32.partialorder %v2279, inf
      %v2348 = vsel %vm2347, %v2279, %v2346
      %vm2349 = vcmp.eq.f32.partialorder %v2279, 0.0
      %v2350 = vand.u32 %v2279, 2147483648
      %v2351 = vsel %vm2349, %v2350, %v2348
      %v2352 = vrsqrt.pop %v2280
      %v2353 = vmul.f32 %v2280, %v2352
      %vm2354 = vcmp.eq.f32.partialorder %v2280, inf
      %v2355 = vsel %vm2354, %v2280, %v2353
      %vm2356 = vcmp.eq.f32.partialorder %v2280, 0.0
      %v2357 = vand.u32 %v2280, 2147483648
      %v2358 = vsel %vm2356, %v2357, %v2355
      %v2359 = vrsqrt.pop %v2281
      %v2360 = vmul.f32 %v2281, %v2359
      %vm2361 = vcmp.eq.f32.partialorder %v2281, inf
      %v2362 = vsel %vm2361, %v2281, %v2360
      %vm2363 = vcmp.eq.f32.partialorder %v2281, 0.0
      %v2364 = vand.u32 %v2281, 2147483648
      %v2365 = vsel %vm2363, %v2364, %v2362
      %v2366 = vrsqrt.pop %v2282
      %v2367 = vmul.f32 %v2282, %v2366
      %vm2368 = vcmp.eq.f32.partialorder %v2282, inf
      %v2369 = vsel %vm2368, %v2282, %v2367
      %vm2370 = vcmp.eq.f32.partialorder %v2282, 0.0
      %v2371 = vand.u32 %v2282, 2147483648
      %v2372 = vsel %vm2370, %v2371, %v2369
      %v2373 = vrsqrt.pop %v2283
      %v2374 = vmul.f32 %v2283, %v2373
      %vm2375 = vcmp.eq.f32.partialorder %v2283, inf
      %v2376 = vsel %vm2375, %v2283, %v2374
      %vm2377 = vcmp.eq.f32.partialorder %v2283, 0.0
      %v2378 = vand.u32 %v2283, 2147483648
      %v2379 = vsel %vm2377, %v2378, %v2376
      %v2380 = vrsqrt.pop %v2284
      %v2381 = vmul.f32 %v2284, %v2380
      %vm2382 = vcmp.eq.f32.partialorder %v2284, inf
      %v2383 = vsel %vm2382, %v2284, %v2381
      %vm2384 = vcmp.eq.f32.partialorder %v2284, 0.0
      %v2385 = vand.u32 %v2284, 2147483648
      %v2386 = vsel %vm2384, %v2385, %v2383
      %v2387 = vrsqrt.pop %v2285
      %v2388 = vmul.f32 %v2285, %v2387
      %vm2389 = vcmp.eq.f32.partialorder %v2285, inf
      %v2390 = vsel %vm2389, %v2285, %v2388
      %vm2391 = vcmp.eq.f32.partialorder %v2285, 0.0
      %v2392 = vand.u32 %v2285, 2147483648
      %v2393 = vsel %vm2391, %v2392, %v2390
      %v2394 = vrsqrt.pop %v2286
      %v2395 = vmul.f32 %v2286, %v2394
      %vm2396 = vcmp.eq.f32.partialorder %v2286, inf
      %v2397 = vsel %vm2396, %v2286, %v2395
      %vm2398 = vcmp.eq.f32.partialorder %v2286, 0.0
      %v2399 = vand.u32 %v2286, 2147483648
      %v2400 = vsel %vm2398, %v2399, %v2397
      %v2401 = vrsqrt.pop %v2287
      %v2402 = vmul.f32 %v2287, %v2401
      %vm2403 = vcmp.eq.f32.partialorder %v2287, inf
      %v2404 = vsel %vm2403, %v2287, %v2402
      %vm2405 = vcmp.eq.f32.partialorder %v2287, 0.0
      %v2406 = vand.u32 %v2287, 2147483648
      %v2407 = vsel %vm2405, %v2406, %v2404
      %v2408 = vrsqrt.pop %v2288
      %v2409 = vmul.f32 %v2288, %v2408
      %vm2410 = vcmp.eq.f32.partialorder %v2288, inf
      %v2411 = vsel %vm2410, %v2288, %v2409
      %vm2412 = vcmp.eq.f32.partialorder %v2288, 0.0
      %v2413 = vand.u32 %v2288, 2147483648
      %v2414 = vsel %vm2412, %v2413, %v2411
      %v2415 = vrsqrt.pop %v2289
      %v2416 = vmul.f32 %v2289, %v2415
      %vm2417 = vcmp.eq.f32.partialorder %v2289, inf
      %v2418 = vsel %vm2417, %v2289, %v2416
      %vm2419 = vcmp.eq.f32.partialorder %v2289, 0.0
      %v2420 = vand.u32 %v2289, 2147483648
      %v2421 = vsel %vm2419, %v2420, %v2418
      %v2422 = vrsqrt.pop %v2290
      %v2423 = vmul.f32 %v2290, %v2422
      %vm2424 = vcmp.eq.f32.partialorder %v2290, inf
      %v2425 = vsel %vm2424, %v2290, %v2423
      %vm2426 = vcmp.eq.f32.partialorder %v2290, 0.0
      %v2427 = vand.u32 %v2290, 2147483648
      %v2428 = vsel %vm2426, %v2427, %v2425
      %v2429 = vrsqrt.pop %v2291
      %v2430 = vmul.f32 %v2291, %v2429
      %vm2431 = vcmp.eq.f32.partialorder %v2291, inf
      %v2432 = vsel %vm2431, %v2291, %v2430
      %vm2433 = vcmp.eq.f32.partialorder %v2291, 0.0
      %v2434 = vand.u32 %v2291, 2147483648
      %v2435 = vsel %vm2433, %v2434, %v2432
      %v2436 = vrsqrt.pop %v2292
      %v2437 = vmul.f32 %v2292, %v2436
      %vm2438 = vcmp.eq.f32.partialorder %v2292, inf
      %v2439 = vsel %vm2438, %v2292, %v2437
      %vm2440 = vcmp.eq.f32.partialorder %v2292, 0.0
      %v2441 = vand.u32 %v2292, 2147483648
      %v2442 = vsel %vm2440, %v2441, %v2439
      %v2443 = vrsqrt.pop %v2293
      %v2444 = vmul.f32 %v2293, %v2443
      %vm2445 = vcmp.eq.f32.partialorder %v2293, inf
      %v2446 = vsel %vm2445, %v2293, %v2444
      %vm2447 = vcmp.eq.f32.partialorder %v2293, 0.0
      %v2448 = vand.u32 %v2293, 2147483648
      %v2449 = vsel %vm2447, %v2448, %v2446
      %v2450 = vrsqrt.pop %v2294
      %v2451 = vmul.f32 %v2294, %v2450
      %vm2452 = vcmp.eq.f32.partialorder %v2294, inf
      %v2453 = vsel %vm2452, %v2294, %v2451
      %vm2454 = vcmp.eq.f32.partialorder %v2294, 0.0
      %v2455 = vand.u32 %v2294, 2147483648
      %v2456 = vsel %vm2454, %v2455, %v2453
      %v2457 = vrsqrt.pop %v2295
      %v2458 = vmul.f32 %v2295, %v2457
      %vm2459 = vcmp.eq.f32.partialorder %v2295, inf
      %v2460 = vsel %vm2459, %v2295, %v2458
      %vm2461 = vcmp.eq.f32.partialorder %v2295, 0.0
      %v2462 = vand.u32 %v2295, 2147483648
      %v2463 = vsel %vm2461, %v2462, %v2460
      %v2464 = vrsqrt.pop %v2296
      %v2465 = vmul.f32 %v2296, %v2464
      %vm2466 = vcmp.eq.f32.partialorder %v2296, inf
      %v2467 = vsel %vm2466, %v2296, %v2465
      %vm2468 = vcmp.eq.f32.partialorder %v2296, 0.0
      %v2469 = vand.u32 %v2296, 2147483648
      %v2470 = vsel %vm2468, %v2469, %v2467
      %v2471 = vrsqrt.pop %v2297
      %v2472 = vmul.f32 %v2297, %v2471
      %vm2473 = vcmp.eq.f32.partialorder %v2297, inf
      %v2474 = vsel %vm2473, %v2297, %v2472
      %vm2475 = vcmp.eq.f32.partialorder %v2297, 0.0
      %v2476 = vand.u32 %v2297, 2147483648
      %v2477 = vsel %vm2475, %v2476, %v2474
      %v2478 = vrsqrt.pop %v2298
      %v2479 = vmul.f32 %v2298, %v2478
      %vm2480 = vcmp.eq.f32.partialorder %v2298, inf
      %v2481 = vsel %vm2480, %v2298, %v2479
      %vm2482 = vcmp.eq.f32.partialorder %v2298, 0.0
      %v2483 = vand.u32 %v2298, 2147483648
      %v2484 = vsel %vm2482, %v2483, %v2481
      %v2485 = vrsqrt.pop %v2299
      %v2486 = vmul.f32 %v2299, %v2485
      %vm2487 = vcmp.eq.f32.partialorder %v2299, inf
      %v2488 = vsel %vm2487, %v2299, %v2486
      %vm2489 = vcmp.eq.f32.partialorder %v2299, 0.0
      %v2490 = vand.u32 %v2299, 2147483648
      %v2491 = vsel %vm2489, %v2490, %v2488
      %v2492 = vrsqrt.pop %v2300
      %v2493 = vmul.f32 %v2300, %v2492
      %vm2494 = vcmp.eq.f32.partialorder %v2300, inf
      %v2495 = vsel %vm2494, %v2300, %v2493
      %vm2496 = vcmp.eq.f32.partialorder %v2300, 0.0
      %v2497 = vand.u32 %v2300, 2147483648
      %v2498 = vsel %vm2496, %v2497, %v2495
      %v2499 = vrsqrt.pop %v2301
      %v2500 = vmul.f32 %v2301, %v2499
      %vm2501 = vcmp.eq.f32.partialorder %v2301, inf
      %v2502 = vsel %vm2501, %v2301, %v2500
      %vm2503 = vcmp.eq.f32.partialorder %v2301, 0.0
      %v2504 = vand.u32 %v2301, 2147483648
      %v2505 = vsel %vm2503, %v2504, %v2502
      %v2506 = vrsqrt.pop %v2302
      %v2507 = vmul.f32 %v2302, %v2506
      %vm2508 = vcmp.eq.f32.partialorder %v2302, inf
      %v2509 = vsel %vm2508, %v2302, %v2507
      %vm2510 = vcmp.eq.f32.partialorder %v2302, 0.0
      %v2511 = vand.u32 %v2302, 2147483648
      %v2512 = vsel %vm2510, %v2511, %v2509
      %v2513 = vrsqrt.pop %v2303
      %v2514 = vmul.f32 %v2303, %v2513
      %vm2515 = vcmp.eq.f32.partialorder %v2303, inf
      %v2516 = vsel %vm2515, %v2303, %v2514
      %vm2517 = vcmp.eq.f32.partialorder %v2303, 0.0
      %v2518 = vand.u32 %v2303, 2147483648
      %v2519 = vsel %vm2517, %v2518, %v2516
      %v2520 = vrsqrt.pop %v2304
      %v2521 = vmul.f32 %v2304, %v2520
      %vm2522 = vcmp.eq.f32.partialorder %v2304, inf
      %v2523 = vsel %vm2522, %v2304, %v2521
      %vm2524 = vcmp.eq.f32.partialorder %v2304, 0.0
      %v2525 = vand.u32 %v2304, 2147483648
      %v2526 = vsel %vm2524, %v2525, %v2523
      %v2527 = vrsqrt.pop %v2305
      %v2528 = vmul.f32 %v2305, %v2527
      %vm2529 = vcmp.eq.f32.partialorder %v2305, inf
      %v2530 = vsel %vm2529, %v2305, %v2528
      %vm2531 = vcmp.eq.f32.partialorder %v2305, 0.0
      %v2532 = vand.u32 %v2305, 2147483648
      %v2533 = vsel %vm2531, %v2532, %v2530
      %v2534 = vrsqrt.pop %v2306
      %v2535 = vmul.f32 %v2306, %v2534
      %vm2536 = vcmp.eq.f32.partialorder %v2306, inf
      %v2537 = vsel %vm2536, %v2306, %v2535
      %vm2538 = vcmp.eq.f32.partialorder %v2306, 0.0
      %v2539 = vand.u32 %v2306, 2147483648
      %v2540 = vsel %vm2538, %v2539, %v2537
      %v2541 = vrsqrt.pop %v2307
      %v2542 = vmul.f32 %v2307, %v2541
      %vm2543 = vcmp.eq.f32.partialorder %v2307, inf
      %v2544 = vsel %vm2543, %v2307, %v2542
      %vm2545 = vcmp.eq.f32.partialorder %v2307, 0.0
      %v2546 = vand.u32 %v2307, 2147483648
      %v2547 = vsel %vm2545, %v2546, %v2544
      %v2548 = vrsqrt.pop %v2308
      %v2549 = vmul.f32 %v2308, %v2548
      %vm2550 = vcmp.eq.f32.partialorder %v2308, inf
      %v2551 = vsel %vm2550, %v2308, %v2549
      %vm2552 = vcmp.eq.f32.partialorder %v2308, 0.0
      %v2553 = vand.u32 %v2308, 2147483648
      %v2554 = vsel %vm2552, %v2553, %v2551
      %v2555 = vrsqrt.pop %v2309
      %v2556 = vmul.f32 %v2309, %v2555
      %vm2557 = vcmp.eq.f32.partialorder %v2309, inf
      %v2558 = vsel %vm2557, %v2309, %v2556
      %vm2559 = vcmp.eq.f32.partialorder %v2309, 0.0
      %v2560 = vand.u32 %v2309, 2147483648
      %v2561 = vsel %vm2559, %v2560, %v2558
      %v2562 = vrsqrt.pop %v2310
      %v2563 = vmul.f32 %v2310, %v2562
      %vm2564 = vcmp.eq.f32.partialorder %v2310, inf
      %v2565 = vsel %vm2564, %v2310, %v2563
      %vm2566 = vcmp.eq.f32.partialorder %v2310, 0.0
      %v2567 = vand.u32 %v2310, 2147483648
      %v2568 = vsel %vm2566, %v2567, %v2565
      %v2569 = vrsqrt.pop %v2311
      %v2570 = vmul.f32 %v2311, %v2569
      %vm2571 = vcmp.eq.f32.partialorder %v2311, inf
      %v2572 = vsel %vm2571, %v2311, %v2570
      %vm2573 = vcmp.eq.f32.partialorder %v2311, 0.0
      %v2574 = vand.u32 %v2311, 2147483648
      %v2575 = vsel %vm2573, %v2574, %v2572
      %v2576 = vrsqrt.pop %v2312
      %v2577 = vmul.f32 %v2312, %v2576
      %vm2578 = vcmp.eq.f32.partialorder %v2312, inf
      %v2579 = vsel %vm2578, %v2312, %v2577
      %vm2580 = vcmp.eq.f32.partialorder %v2312, 0.0
      %v2581 = vand.u32 %v2312, 2147483648
      %v2582 = vsel %vm2580, %v2581, %v2579
      %v2583 = vrsqrt.pop %v2313
      %v2584 = vmul.f32 %v2313, %v2583
      %vm2585 = vcmp.eq.f32.partialorder %v2313, inf
      %v2586 = vsel %vm2585, %v2313, %v2584
      %vm2587 = vcmp.eq.f32.partialorder %v2313, 0.0
      %v2588 = vand.u32 %v2313, 2147483648
      %v2589 = vsel %vm2587, %v2588, %v2586
      %v2590 = vrsqrt.pop %v2314
      %v2591 = vmul.f32 %v2314, %v2590
      %vm2592 = vcmp.eq.f32.partialorder %v2314, inf
      %v2593 = vsel %vm2592, %v2314, %v2591
      %vm2594 = vcmp.eq.f32.partialorder %v2314, 0.0
      %v2595 = vand.u32 %v2314, 2147483648
      %v2596 = vsel %vm2594, %v2595, %v2593
      %v2597 = vrsqrt.pop %v2315
      %v2598 = vmul.f32 %v2315, %v2597
      %vm2599 = vcmp.eq.f32.partialorder %v2315, inf
      %v2600 = vsel %vm2599, %v2315, %v2598
      %vm2601 = vcmp.eq.f32.partialorder %v2315, 0.0
      %v2602 = vand.u32 %v2315, 2147483648
      %v2603 = vsel %vm2601, %v2602, %v2600
      %v2604 = vrsqrt.pop %v2316
      %v2605 = vmul.f32 %v2316, %v2604
      %vm2606 = vcmp.eq.f32.partialorder %v2316, inf
      %v2607 = vsel %vm2606, %v2316, %v2605
      %vm2608 = vcmp.eq.f32.partialorder %v2316, 0.0
      %v2609 = vand.u32 %v2316, 2147483648
      %v2610 = vsel %vm2608, %v2609, %v2607
      %v2611 = vrsqrt.pop %v2317
      %v2612 = vmul.f32 %v2317, %v2611
      %vm2613 = vcmp.eq.f32.partialorder %v2317, inf
      %v2614 = vsel %vm2613, %v2317, %v2612
      %vm2615 = vcmp.eq.f32.partialorder %v2317, 0.0
      %v2616 = vand.u32 %v2317, 2147483648
      %v2617 = vsel %vm2615, %v2616, %v2614
      %v2618 = vrsqrt.pop %v2318
      %v2619 = vmul.f32 %v2318, %v2618
      %vm2620 = vcmp.eq.f32.partialorder %v2318, inf
      %v2621 = vsel %vm2620, %v2318, %v2619
      %vm2622 = vcmp.eq.f32.partialorder %v2318, 0.0
      %v2623 = vand.u32 %v2318, 2147483648
      %v2624 = vsel %vm2622, %v2623, %v2621
      %v2625 = vrsqrt.pop %v2319
      %v2626 = vmul.f32 %v2319, %v2625
      %vm2627 = vcmp.eq.f32.partialorder %v2319, inf
      %v2628 = vsel %vm2627, %v2319, %v2626
      %vm2629 = vcmp.eq.f32.partialorder %v2319, 0.0
      %v2630 = vand.u32 %v2319, 2147483648
      %v2631 = vsel %vm2629, %v2630, %v2628
      %v2632 = vrsqrt.pop %v2320
      %v2633 = vmul.f32 %v2320, %v2632
      %vm2634 = vcmp.eq.f32.partialorder %v2320, inf
      %v2635 = vsel %vm2634, %v2320, %v2633
      %vm2636 = vcmp.eq.f32.partialorder %v2320, 0.0
      %v2637 = vand.u32 %v2320, 2147483648
      %v2638 = vsel %vm2636, %v2637, %v2635
      %v2639 = vrsqrt.pop %v2321
      %v2640 = vmul.f32 %v2321, %v2639
      %vm2641 = vcmp.eq.f32.partialorder %v2321, inf
      %v2642 = vsel %vm2641, %v2321, %v2640
      %vm2643 = vcmp.eq.f32.partialorder %v2321, 0.0
      %v2644 = vand.u32 %v2321, 2147483648
      %v2645 = vsel %vm2643, %v2644, %v2642
      %v2646 = vrsqrt.pop %v2322
      %v2647 = vmul.f32 %v2322, %v2646
      %vm2648 = vcmp.eq.f32.partialorder %v2322, inf
      %v2649 = vsel %vm2648, %v2322, %v2647
      %vm2650 = vcmp.eq.f32.partialorder %v2322, 0.0
      %v2651 = vand.u32 %v2322, 2147483648
      %v2652 = vsel %vm2650, %v2651, %v2649
      %v2653 = vrsqrt.pop %v2323
      %v2654 = vmul.f32 %v2323, %v2653
      %vm2655 = vcmp.eq.f32.partialorder %v2323, inf
      %v2656 = vsel %vm2655, %v2323, %v2654
      %vm2657 = vcmp.eq.f32.partialorder %v2323, 0.0
      %v2658 = vand.u32 %v2323, 2147483648
      %v2659 = vsel %vm2657, %v2658, %v2656
      %vm2660 = vcmask 130048
      %2661 = vst.msk [vmem:[%s228] sm:$0xff] %vm2660, %v1029
      %2662 = vst.msk [vmem:[%s228 + $0x8] sm:$0xff] %vm2660, %v1032
      %2663 = vst.msk [vmem:[%s228 + $0x10] sm:$0xff] %vm2660, %v1037
      %2664 = vst.msk [vmem:[%s228 + $0x18] sm:$0xff] %vm2660, %v1040
      %2665 = vst.msk [vmem:[%s228 + $0x20] sm:$0xff] %vm2660, %v1045
      %2666 = vst.msk [vmem:[%s228 + $0x28] sm:$0xff] %vm2660, %v1048
      %2667 = vst.msk [vmem:[%s228 + $0x30] sm:$0xff] %vm2660, %v1053
      %2668 = vst.msk [vmem:[%s228 + $0x38] sm:$0xff] %vm2660, %v1056
      %2669 = vst.msk [vmem:[%s228 + $0x40] sm:$0xff] %vm2660, %v1061
      %2670 = vst.msk [vmem:[%s228 + $0x48] sm:$0xff] %vm2660, %v1064
      %2671 = vst.msk [vmem:[%s228 + $0x50] sm:$0xff] %vm2660, %v1069
      %2672 = vst.msk [vmem:[%s228 + $0x58] sm:$0xff] %vm2660, %v1072
      %2673 = vst.msk [vmem:[%s228 + $0x60] sm:$0xff] %vm2660, %v1077
      %2674 = vst.msk [vmem:[%s228 + $0x68] sm:$0xff] %vm2660, %v1080
      %2675 = vst.msk [vmem:[%s228 + $0x70] sm:$0xff] %vm2660, %v1085
      %2676 = vst.msk [vmem:[%s228 + $0x78] sm:$0xff] %vm2660, %v1088
      %2677 = vst.msk [vmem:[%s228 + $0x80] sm:$0xff] %vm2660, %v1093
      %2678 = vst.msk [vmem:[%s228 + $0x88] sm:$0xff] %vm2660, %v1096
      %2679 = vst.msk [vmem:[%s228 + $0x90] sm:$0xff] %vm2660, %v1101
      %2680 = vst.msk [vmem:[%s228 + $0x98] sm:$0xff] %vm2660, %v1104
      %2681 = vst.msk [vmem:[%s228 + $0xa0] sm:$0xff] %vm2660, %v1109
      %2682 = vst.msk [vmem:[%s228 + $0xa8] sm:$0xff] %vm2660, %v1112
      %2683 = vst.msk [vmem:[%s228 + $0xb0] sm:$0xff] %vm2660, %v1117
      %2684 = vst.msk [vmem:[%s228 + $0xb8] sm:$0xff] %vm2660, %v1120
      %2685 = vst.msk [vmem:[%s228 + $0xc0] sm:$0xff] %vm2660, %v1125
      %2686 = vst.msk [vmem:[%s228 + $0xc8] sm:$0xff] %vm2660, %v1128
      %2687 = vst.msk [vmem:[%s228 + $0xd0] sm:$0xff] %vm2660, %v1133
      %2688 = vst.msk [vmem:[%s228 + $0xd8] sm:$0xff] %vm2660, %v1136
      %2689 = vst.msk [vmem:[%s228 + $0xe0] sm:$0xff] %vm2660, %v1141
      %2690 = vst.msk [vmem:[%s228 + $0xe8] sm:$0xff] %vm2660, %v1144
      %2691 = vst.msk [vmem:[%s228 + $0xf0] sm:$0xff] %vm2660, %v1149
      %2692 = vst.msk [vmem:[%s228 + $0xf8] sm:$0xff] %vm2660, %v1152
      %2693 = vst.msk [vmem:[%s228 + $0x100] sm:$0xff] %vm2660, %v1157
      %2694 = vst.msk [vmem:[%s228 + $0x108] sm:$0xff] %vm2660, %v1160
      %2695 = vst.msk [vmem:[%s228 + $0x110] sm:$0xff] %vm2660, %v1165
      %2696 = vst.msk [vmem:[%s228 + $0x118] sm:$0xff] %vm2660, %v1168
      %2697 = vst.msk [vmem:[%s228 + $0x120] sm:$0xff] %vm2660, %v1173
      %2698 = vst.msk [vmem:[%s228 + $0x128] sm:$0xff] %vm2660, %v1176
      %2699 = vst.msk [vmem:[%s228 + $0x130] sm:$0xff] %vm2660, %v1181
      %2700 = vst.msk [vmem:[%s228 + $0x138] sm:$0xff] %vm2660, %v1184
      %2701 = vst.msk [vmem:[%s228 + $0x140] sm:$0xff] %vm2660, %v1189
      %2702 = vst.msk [vmem:[%s228 + $0x148] sm:$0xff] %vm2660, %v1192
      %2703 = vst.msk [vmem:[%s228 + $0x150] sm:$0xff] %vm2660, %v1197
      %2704 = vst.msk [vmem:[%s228 + $0x158] sm:$0xff] %vm2660, %v1200
      %2705 = vst.msk [vmem:[%s228 + $0x160] sm:$0xff] %vm2660, %v1205
      %2706 = vst.msk [vmem:[%s228 + $0x168] sm:$0xff] %vm2660, %v1208
      %2707 = vst.msk [vmem:[%s228 + $0x170] sm:$0xff] %vm2660, %v1213
      %2708 = vst.msk [vmem:[%s228 + $0x178] sm:$0xff] %vm2660, %v1216
      %2709 = vst.msk [vmem:[%s228 + $0x180] sm:$0xff] %vm2660, %v1221
      %2710 = vst.msk [vmem:[%s228 + $0x188] sm:$0xff] %vm2660, %v1224
      %2711 = vst.msk [vmem:[%s228 + $0x190] sm:$0xff] %vm2660, %v1229
      %2712 = vst.msk [vmem:[%s228 + $0x198] sm:$0xff] %vm2660, %v1232
      %2713 = vst.msk [vmem:[%s228 + $0x1a0] sm:$0xff] %vm2660, %v1237
      %2714 = vst.msk [vmem:[%s228 + $0x1a8] sm:$0xff] %vm2660, %v1240
      %2715 = vst.msk [vmem:[%s228 + $0x1b0] sm:$0xff] %vm2660, %v1245
      %2716 = vst.msk [vmem:[%s228 + $0x1b8] sm:$0xff] %vm2660, %v1248
      %2717 = vst.msk [vmem:[%s228 + $0x1c0] sm:$0xff] %vm2660, %v1253
      %2718 = vst.msk [vmem:[%s228 + $0x1c8] sm:$0xff] %vm2660, %v1256
      %2719 = vst.msk [vmem:[%s228 + $0x1d0] sm:$0xff] %vm2660, %v1261
      %2720 = vst.msk [vmem:[%s228 + $0x1d8] sm:$0xff] %vm2660, %v1264
      %2721 = vst.msk [vmem:[%s228 + $0x1e0] sm:$0xff] %vm2660, %v1269
      %2722 = vst.msk [vmem:[%s228 + $0x1e8] sm:$0xff] %vm2660, %v1272
      %2723 = vst.msk [vmem:[%s228 + $0x1f0] sm:$0xff] %vm2660, %v1277
      %2724 = vst.msk [vmem:[%s228 + $0x1f8] sm:$0xff] %vm2660, %v1280
      %s2725 = scalar_lea.vmem %s228, 512
      %2726 = vst.msk [vmem:[%s2725] sm:$0xff] %vm2660, %v2330
      %2727 = vst.msk [vmem:[%s2725 + $0x8] sm:$0xff] %vm2660, %v2337
      %2728 = vst.msk [vmem:[%s2725 + $0x10] sm:$0xff] %vm2660, %v2344
      %2729 = vst.msk [vmem:[%s2725 + $0x18] sm:$0xff] %vm2660, %v2351
      %2730 = vst.msk [vmem:[%s2725 + $0x20] sm:$0xff] %vm2660, %v2358
      %2731 = vst.msk [vmem:[%s2725 + $0x28] sm:$0xff] %vm2660, %v2365
      %2732 = vst.msk [vmem:[%s2725 + $0x30] sm:$0xff] %vm2660, %v2372
      %2733 = vst.msk [vmem:[%s2725 + $0x38] sm:$0xff] %vm2660, %v2379
      %2734 = vst.msk [vmem:[%s2725 + $0x40] sm:$0xff] %vm2660, %v2386
      %2735 = vst.msk [vmem:[%s2725 + $0x48] sm:$0xff] %vm2660, %v2393
      %2736 = vst.msk [vmem:[%s2725 + $0x50] sm:$0xff] %vm2660, %v2400
      %2737 = vst.msk [vmem:[%s2725 + $0x58] sm:$0xff] %vm2660, %v2407
      %2738 = vst.msk [vmem:[%s2725 + $0x60] sm:$0xff] %vm2660, %v2414
      %2739 = vst.msk [vmem:[%s2725 + $0x68] sm:$0xff] %vm2660, %v2421
      %2740 = vst.msk [vmem:[%s2725 + $0x70] sm:$0xff] %vm2660, %v2428
      %2741 = vst.msk [vmem:[%s2725 + $0x78] sm:$0xff] %vm2660, %v2435
      %2742 = vst.msk [vmem:[%s2725 + $0x80] sm:$0xff] %vm2660, %v2442
      %2743 = vst.msk [vmem:[%s2725 + $0x88] sm:$0xff] %vm2660, %v2449
      %2744 = vst.msk [vmem:[%s2725 + $0x90] sm:$0xff] %vm2660, %v2456
      %2745 = vst.msk [vmem:[%s2725 + $0x98] sm:$0xff] %vm2660, %v2463
      %2746 = vst.msk [vmem:[%s2725 + $0xa0] sm:$0xff] %vm2660, %v2470
      %2747 = vst.msk [vmem:[%s2725 + $0xa8] sm:$0xff] %vm2660, %v2477
      %2748 = vst.msk [vmem:[%s2725 + $0xb0] sm:$0xff] %vm2660, %v2484
      %2749 = vst.msk [vmem:[%s2725 + $0xb8] sm:$0xff] %vm2660, %v2491
      %2750 = vst.msk [vmem:[%s2725 + $0xc0] sm:$0xff] %vm2660, %v2498
      %2751 = vst.msk [vmem:[%s2725 + $0xc8] sm:$0xff] %vm2660, %v2505
      %2752 = vst.msk [vmem:[%s2725 + $0xd0] sm:$0xff] %vm2660, %v2512
      %2753 = vst.msk [vmem:[%s2725 + $0xd8] sm:$0xff] %vm2660, %v2519
      %2754 = vst.msk [vmem:[%s2725 + $0xe0] sm:$0xff] %vm2660, %v2526
      %2755 = vst.msk [vmem:[%s2725 + $0xe8] sm:$0xff] %vm2660, %v2533
      %2756 = vst.msk [vmem:[%s2725 + $0xf0] sm:$0xff] %vm2660, %v2540
      %2757 = vst.msk [vmem:[%s2725 + $0xf8] sm:$0xff] %vm2660, %v2547
      %2758 = vst.msk [vmem:[%s2725 + $0x100] sm:$0xff] %vm2660, %v2554
      %2759 = vst.msk [vmem:[%s2725 + $0x108] sm:$0xff] %vm2660, %v2561
      %2760 = vst.msk [vmem:[%s2725 + $0x110] sm:$0xff] %vm2660, %v2568
      %2761 = vst.msk [vmem:[%s2725 + $0x118] sm:$0xff] %vm2660, %v2575
      %2762 = vst.msk [vmem:[%s2725 + $0x120] sm:$0xff] %vm2660, %v2582
      %2763 = vst.msk [vmem:[%s2725 + $0x128] sm:$0xff] %vm2660, %v2589
      %2764 = vst.msk [vmem:[%s2725 + $0x130] sm:$0xff] %vm2660, %v2596
      %2765 = vst.msk [vmem:[%s2725 + $0x138] sm:$0xff] %vm2660, %v2603
      %2766 = vst.msk [vmem:[%s2725 + $0x140] sm:$0xff] %vm2660, %v2610
      %2767 = vst.msk [vmem:[%s2725 + $0x148] sm:$0xff] %vm2660, %v2617
      %2768 = vst.msk [vmem:[%s2725 + $0x150] sm:$0xff] %vm2660, %v2624
      %2769 = vst.msk [vmem:[%s2725 + $0x158] sm:$0xff] %vm2660, %v2631
      %2770 = vst.msk [vmem:[%s2725 + $0x160] sm:$0xff] %vm2660, %v2638
      %2771 = vst.msk [vmem:[%s2725 + $0x168] sm:$0xff] %vm2660, %v2645
      %2772 = vst.msk [vmem:[%s2725 + $0x170] sm:$0xff] %vm2660, %v2652
      %2773 = vst.msk [vmem:[%s2725 + $0x178] sm:$0xff] %vm2660, %v2659
      %p2774 = scmp.lt.s32.totalorder %s19, 1
      %s2775 = scalar_select %p2774, %s19, 1
      %p2776 = scmp.lt.s32.totalorder %s20, 0
      %s2777 = scalar_select %p2776, %s20, 0
      %s2778 = smul.addr %s2775, 112
      %s2779 = sadd.s32 %s2777, %s2778
      %s2780 = smul.addr %s2779, 8
      %s2781 = scalar_lea.vmem %s4, %s2780
      // Predicated region
      $region37: #{wavelet_cnn1d_feature_extractor.1} parent=35 // pred_check
        %p2782 = pneg %p138
      $region38: #{wavelet_cnn1d_feature_extractor.1} parent=35 // pred_check_branch
        %2784 = sbr.rel (%p2782) target = $region40
      $region39: #{wavelet_cnn1d_feature_extractor.1} parent=35 // pred_region
        _
      $region40: #{wavelet_cnn1d_feature_extractor.1} parent=35 // pred_fallthru
        _
    $region36: #{wavelet_cnn1d_feature_extractor.1} parent=5 // pred_fallthru
      _
    %p2785 = scmp.le.s32.totalorder 2, %s10
    // Predicated region
    $region41: #{wavelet_cnn1d_feature_extractor.1} parent=5 // pred_check
      %p2786 = pneg %p2785
    $region42: #{wavelet_cnn1d_feature_extractor.1} parent=5 // pred_check_branch
      %2788 = sbr.rel (%p2786) target = $region44
    $region43: #{wavelet_cnn1d_feature_extractor.1} parent=5 // pred_region
      %s2789 = ssub.s32 %s10, 2
      // Predicated region
      $region45: #{wavelet_cnn1d_feature_extractor.1} parent=43 // pred_check
        %p2790 = pneg %p144
      $region46: #{wavelet_cnn1d_feature_extractor.1} parent=43 // pred_check_branch
        %2792 = sbr.rel (%p2790) target = $region48
      $region47: #{wavelet_cnn1d_feature_extractor.1} parent=43 // pred_region
        %p2793 = scmp.lt.s32.totalorder %s21, 1
        %s2794 = scalar_select %p2793, %s21, 1
        %p2795 = scmp.lt.s32.totalorder %s22, 0
        %s2796 = scalar_select %p2795, %s22, 0
        %s2797 = smul.addr %s2794, 112
        %s2798 = sadd.s32 %s2796, %s2797
        %s2799 = smul.addr %s2798, 8
        %s2800 = scalar_lea.vmem %s4, %s2799
      $region48: #{wavelet_cnn1d_feature_extractor.1} parent=43 // pred_fallthru
        _
    $region44: #{wavelet_cnn1d_feature_extractor.1} parent=5 // pred_fallthru
      _
  $region6: #{wavelet_cnn1d_feature_extractor.1} parent=0 // loop_footer
    %s14 = sadd.s32 1, %s10
  $region7: #{wavelet_cnn1d_feature_extractor.1} parent=0 // loop_footer_branch
    %9 = sbr.rel target = $region3
  $region8: #{wavelet_cnn1d_feature_extractor.1} parent=0 // loop_exit
    _

</llo_original>
